<compile_context>
chip_gen: v6e
topology: v6e:2x2x1
jax: 0.10.0
libtpu: 0.0.40
codegen_flags: <defaults>
</compile_context>

<pallas_src>
import functools

import jax
import jax.numpy as jnp
from jax.experimental import pallas as pl
from jax.experimental.pallas import tpu as pltpu

NUM_LAYERS = 5          # layer1, layer2, layer3, sequential[0], module_list[0] (each + ReLU)
LANE = 128              # TPU lane width
MXU_ALIGN = 256         # v6e/v7x MXU is 2x256x256; multiple of 128 so also fine on v5e
SUBLANE_BF16 = 16       # bf16 packs 2 rows per sublane -> keep batch tiles 16-aligned


def _round_up(n, m):
    return (n + m - 1) // m * m


def _mlp_kernel(x_ref, w_ref, b_ref, o_ref, h_ref):
    """One (batch_tile, layer) grid step of the fused 5-layer Linear+ReLU stack.

    x_ref: (TB, Dp)      bf16 input tile (fetched once per batch tile)
    w_ref: (1, Dp, Dp)   bf16 weights of the current layer, (in, out) layout
    b_ref: (1, 1, Dp)    f32 bias of the current layer
    o_ref: (TB, Dp)      f32 output tile (written on the last layer step)
    h_ref: (TB, Dp)      bf16 VMEM scratch carrying the activation across layer steps
    """
    layer = pl.program_id(1)

    @pl.when(layer == 0)
    def _():
        h_ref[...] = x_ref[...].astype(h_ref.dtype)

    acc = jnp.dot(h_ref[...], w_ref[0], preferred_element_type=jnp.float32)  # MXU, f32 acc
    h = jnp.maximum(acc + b_ref[0], 0.0)                                     # f32 bias + ReLU
    h_ref[...] = h.astype(h_ref.dtype)                                       # bf16 carry

    @pl.when(layer == pl.num_programs(1) - 1)
    def _():
        o_ref[...] = h.astype(o_ref.dtype)


def prepare_params(weights, biases, *, weight_dtype=jnp.bfloat16):
    """One-time repacking of PyTorch-layout params (model-load time, not per step).

    weights: NUM_LAYERS arrays, each (D, D) in PyTorch (out, in) layout
    biases:  NUM_LAYERS arrays, each (D,)
    Returns (w_stack, b_stack): (L, Dp, Dp) weight_dtype in (in, out) layout and
    (L, 1, Dp) float32, with D zero-padded to a multiple of 256 (full MXU tiles on all gens).
    """
    d = weights[0].shape[0]
    d_pad = _round_up(d, MXU_ALIGN)
    w_stack = jnp.zeros((NUM_LAYERS, d_pad, d_pad), weight_dtype)
    b_stack = jnp.zeros((NUM_LAYERS, 1, d_pad), jnp.float32)
    for layer, (w, b) in enumerate(zip(weights, biases)):
        w_stack = w_stack.at[layer, :d, :d].set(w.T.astype(weight_dtype))
        b_stack = b_stack.at[layer, 0, :d].set(b.astype(jnp.float32))
    return w_stack, b_stack


def _select_batch_tile(batch):
    # >= 2 tiles so the "parallel" batch axis shards across v7x's two TensorCores;
    # 16-row granularity keeps bf16 sublane packing clean and avoids padding to 128.
    n_tiles = 2 if batch >= 2 * SUBLANE_BF16 else 1
    return _round_up(pl.cdiv(batch, n_tiles), SUBLANE_BF16)


@functools.lru_cache(maxsize=None)
def _build_forward(batch, dim, d_pad, out_dtype_name):
    """Build + jit the full forward (pad -> pallas_call -> slice) for a static (B, D)."""
    batch_tile = _select_batch_tile(batch)
    num_btiles = pl.cdiv(batch, batch_tile)
    b_pad = num_btiles * batch_tile
    out_dtype = jnp.dtype(out_dtype_name)

    grid_spec = pltpu.PrefetchScalarGridSpec(
        num_scalar_prefetch=0,
        grid=(num_btiles, NUM_LAYERS),  # layer axis innermost: per-layer weight pipelining
        in_specs=[
            pl.BlockSpec((batch_tile, d_pad), lambda i, l: (i, 0)),       # x (constant in l)
            pl.BlockSpec((1, d_pad, d_pad), lambda i, l: (l, 0, 0)),      # one layer's weights
            pl.BlockSpec((1, 1, d_pad), lambda i, l: (l, 0, 0)),          # one layer's bias
        ],
        out_specs=pl.BlockSpec((batch_tile, d_pad), lambda i, l: (i, 0)),  # resident over l
        scratch_shapes=[pltpu.VMEM((batch_tile, d_pad), jnp.bfloat16)],    # activation carry
    )
    fwd = pl.pallas_call(
        _mlp_kernel,
        out_shape=jax.ShapeDtypeStruct((b_pad, d_pad), out_dtype),
        grid_spec=grid_spec,
        compiler_params=pltpu.CompilerParams(
            dimension_semantics=("parallel", "arbitrary"),
        ),
    )

    @jax.jit
    def forward(x, w_stack, b_stack):
        # Zero-pad batch to the tile multiple and features to Dp; feed activations as bf16.
        xp = jnp.zeros((b_pad, d_pad), jnp.bfloat16).at[:batch, :dim].set(
            x.astype(jnp.bfloat16))
        out = fwd(xp, w_stack, b_stack)
        return out[:batch, :dim]

    return forward


def pretrained_model_forward(x, w_stack, b_stack):
    """Pallas forward pass matching PreTrainedModel.forward.

    x:       (B, D) float32
    w_stack: (NUM_LAYERS, Dp, Dp) as produced by prepare_params
    b_stack: (NUM_LAYERS, 1, Dp)  as produced by prepare_params
    """
    batch, dim = x.shape
    d_pad = w_stack.shape[-1]
    fwd = _build_forward(batch, dim, d_pad, jnp.float32.dtype.name)
    return fwd(x, w_stack, b_stack)


def _init_params(key, dim):
    """Deterministic init mimicking nn.Linear default: U(-1/sqrt(in), 1/sqrt(in))."""
    weights, biases = [], []
    bound = 1.0 / (dim ** 0.5)
    for _ in range(NUM_LAYERS):
        key, kw, kb = jax.random.split(key, 3)
        weights.append(jax.random.uniform(kw, (dim, dim), jnp.float32, -bound, bound))
        biases.append(jax.random.uniform(kb, (dim,), jnp.float32, -bound, bound))
    return weights, biases


def _reference_forward(x, weights, biases):
    h = x
    for w, b in zip(weights, biases):
        h = jnp.maximum(h @ w.T + b, 0.0)
    return h


if __name__ == "__main__":
    DIM = 500    # as in the PyTorch module; padded to 512 inside prepare_params
    BATCH = 200  # not a multiple of the tile -> exercises cdiv + batch padding (2 tiles of 112)

    key = jax.random.PRNGKey(0)
    key, kx = jax.random.split(key)
    x = jax.random.normal(kx, (BATCH, DIM), jnp.float32)
    weights, biases = _init_params(key, DIM)

    # One-time repacking (transpose/stack/pad/bf16-cast) -- hoisted out of the forward path.
    w_stack, b_stack = prepare_params(weights, biases)

    out = pretrained_model_forward(x, w_stack, b_stack)
    out = jax.block_until_ready(out)

    ref = _reference_forward(x, weights, biases)
    assert out.shape == (BATCH, DIM)
    # bf16 weights/activations with f32 accumulation: relaxed tolerance vs the f32 reference.
    assert jnp.allclose(out, ref, atol=5e-2, rtol=5e-2), (
        f"mismatch vs JAX reference, max abs err {jnp.max(jnp.abs(out - ref)):.4f}"
    )
    print("KERNEL_OK")
</pallas_src>

<mosaic_0001>
module attributes {stable_mosaic.version = 11 : i64} {
  func.func @_mlp_kernel(%arg0: i32, %arg1: i32, %arg2: memref<112x512xbf16, #tpu.memory_space<vmem>>, %arg3: memref<1x512x512xbf16, #tpu.memory_space<vmem>>, %arg4: memref<1x1x512xf32, #tpu.memory_space<vmem>>, %arg5: memref<112x512xf32, #tpu.memory_space<vmem>>, %arg6: memref<112x512xbf16, #tpu.memory_space<vmem>>) attributes {dimension_semantics = [#tpu.dimension_semantics<parallel>, #tpu.dimension_semantics<arbitrary>], iteration_bounds = array<i64: 2, 5>, scalar_prefetch = 0 : i64, scratch_operands = 1 : i64, tpu.core_type = #tpu.core_type<tc>, window_params = [{transform_indices = @transform_0, window_bounds = array<i64: 112, 512>}, {transform_indices = @transform_1, window_bounds = array<i64: 1, 512, 512>}, {transform_indices = @transform_2, window_bounds = array<i64: 1, 1, 512>}, {transform_indices = @transform_3, window_bounds = array<i64: 112, 512>}]} {
    %c0_i32 = arith.constant 0 : i32
    %0 = arith.cmpi eq, %arg1, %c0_i32 : i32
    %1 = arith.extui %0 : i1 to i32
    %c0_i32_0 = arith.constant 0 : i32
    %2 = arith.cmpi ne, %1, %c0_i32_0 : i32
    scf.if %2 {
      %c0_12 = arith.constant 0 : index
      %c0_13 = arith.constant 0 : index
      %18 = vector.load %arg2[%c0_12, %c0_13] : memref<112x512xbf16, #tpu.memory_space<vmem>>, vector<112x512xbf16>
      %c0_14 = arith.constant 0 : index
      %c0_15 = arith.constant 0 : index
      %19 = vector.load %arg6[%c0_14, %c0_15] : memref<112x512xbf16, #tpu.memory_space<vmem>>, vector<112x512xbf16>
      tpu.vector_store %arg6[%c0_14, %c0_15], %18 {strides = array<i32>} : memref<112x512xbf16, #tpu.memory_space<vmem>>, vector<112x512xbf16>,
    } else {
    }
    %c0 = arith.constant 0 : index
    %c0_1 = arith.constant 0 : index
    %3 = vector.load %arg6[%c0, %c0_1] : memref<112x512xbf16, #tpu.memory_space<vmem>>, vector<112x512xbf16>
    %c0_2 = arith.constant 0 : index
    %c0_3 = arith.constant 0 : index
    %c0_4 = arith.constant 0 : index
    %4 = vector.load %arg3[%c0_2, %c0_3, %c0_4] : memref<1x512x512xbf16, #tpu.memory_space<vmem>>, vector<1x512x512xbf16>
    %5 = vector.shape_cast %4 : vector<1x512x512xbf16> to vector<512x512xbf16>
    %cst = arith.constant dense<0.000000e+00> : vector<112x512xf32>
    %6 = tpu.matmul %3, %5, %cst {dimension_numbers = #tpu.dot_dimension_numbers<[1], [0], [0], [1], [0, 0, 1, 1], [], []>} : vector<112x512xbf16>, vector<512x512xbf16>, vector<112x512xf32> -> vector<112x512xf32>
    %c0_5 = arith.constant 0 : index
    %c0_6 = arith.constant 0 : index
    %c0_7 = arith.constant 0 : index
    %7 = vector.load %arg4[%c0_5, %c0_6, %c0_7] : memref<1x1x512xf32, #tpu.memory_space<vmem>>, vector<1x1x512xf32>
    %8 = vector.shape_cast %7 : vector<1x1x512xf32> to vector<1x512xf32>
    %9 = vector.broadcast %8 : vector<1x512xf32> to vector<112x512xf32>
    %10 = arith.addf %6, %9 : vector<112x512xf32>
    %cst_8 = arith.constant 0.000000e+00 : f32
    %11 = vector.broadcast %cst_8 : f32 to vector<112x512xf32>
    %12 = arith.maximumf %10, %11 : vector<112x512xf32>
    %13 = arith.truncf %12 : vector<112x512xf32> to vector<112x512xbf16>
    %c0_9 = arith.constant 0 : index
    %c0_10 = arith.constant 0 : index
    %14 = vector.load %arg6[%c0_9, %c0_10] : memref<112x512xbf16, #tpu.memory_space<vmem>>, vector<112x512xbf16>
    tpu.vector_store %arg6[%c0_9, %c0_10], %13 {strides = array<i32>} : memref<112x512xbf16, #tpu.memory_space<vmem>>, vector<112x512xbf16>,
    %c4_i32 = arith.constant 4 : i32
    %15 = arith.cmpi eq, %arg1, %c4_i32 : i32
    %16 = arith.extui %15 : i1 to i32
    %c0_i32_11 = arith.constant 0 : i32
    %17 = arith.cmpi ne, %16, %c0_i32_11 : i32
    scf.if %17 {
      %c0_12 = arith.constant 0 : index
      %c0_13 = arith.constant 0 : index
      %18 = vector.load %arg5[%c0_12, %c0_13] : memref<112x512xf32, #tpu.memory_space<vmem>>, vector<112x512xf32>
      tpu.vector_store %arg5[%c0_12, %c0_13], %12 {strides = array<i32>} : memref<112x512xf32, #tpu.memory_space<vmem>>, vector<112x512xf32>,
    } else {
    }
    return
  }
  func.func @transform_0(%arg0: i32, %arg1: i32) -> (i32, i32) {
    %c0_i32 = arith.constant 0 : i32
    %c0_i32_0 = arith.constant 0 : i32
    return %arg0, %c0_i32 : i32, i32
  }
  func.func @transform_1(%arg0: i32, %arg1: i32) -> (i32, i32, i32) {
    %c0_i32 = arith.constant 0 : i32
    %c0_i32_0 = arith.constant 0 : i32
    %c0_i32_1 = arith.constant 0 : i32
    return %arg1, %c0_i32, %c0_i32_0 : i32, i32, i32
  }
  func.func @transform_2(%arg0: i32, %arg1: i32) -> (i32, i32, i32) {
    %c0_i32 = arith.constant 0 : i32
    %c0_i32_0 = arith.constant 0 : i32
    %c0_i32_1 = arith.constant 0 : i32
    return %arg1, %c0_i32, %c0_i32_0 : i32, i32, i32
  }
  func.func @transform_3(%arg0: i32, %arg1: i32) -> (i32, i32) {
    %c0_i32 = arith.constant 0 : i32
    %c0_i32_0 = arith.constant 0 : i32
    return %arg0, %c0_i32 : i32, i32
  }
}

</mosaic_0001>

<llo_original>
// kernel: forward.1
$region0: #{forward.1}
  #allocation0 [shape = 'u32[]', space=smem, size = 0x4, offset = 0x4, fixed_abs, tag = 'smem constant byte address 0x4 - core index']
  #allocation1 [shape = 'u32[144,128]{1,0:T(1,128)}', space=vmem, size = 0x12000, scoped, tag = 'internal scratch']
  #allocation2 [shape = 'bf16[112,512]{1,0:T(8,128)(2,1)}', space=vmem, size = 0x1c000, scoped, tag = 'scratch operand']
  %s0 = inlined_call_operand.vmem [shape: bf16[224,512], index: 0, kind: input, shape index: {}]
  %s1 = inlined_call_operand.hbm [shape: bf16[5,512,512], index: 1, kind: input, shape index: {}]
  %s2 = inlined_call_operand.hbm [shape: f32[5,1,512], index: 2, kind: input, shape index: {}]
  %s3 = inlined_call_operand.vmem [shape: f32[224,512], index: 3, kind: output, shape index: {}]
  %s4 = sld [smem:[#allocation0]]
  $region61: #{forward.1} parent=0
    _
  %s6 = ssub.s32 1, %s4
  %s7 = scalar_select 0, %s6, %s4
  $region1: #{forward.1} parent=0
    #allocation3 [shape = 'u8[1048576]{0}', space=vmem, size = 0x100000, scoped, tag = 'input window, operand 1']
    #allocation4 [shape = 's32[2]{0}', space=sflag, size = 0x8, scoped, tag = 'scoped memory for forward.1']
    #allocation5 [shape = 'u8[4096]{0}', space=vmem, size = 0x1000, scoped, tag = 'input window, operand 2']
    #allocation6 [shape = 's32[2]{0}', space=sflag, size = 0x8, scoped, tag = 'scoped memory for forward.1']
    %8 = vsyncpa [#allocation4], 0
    %s9 = scalar_lea.sflag [#allocation4], 1
    %10 = vsyncpa %s9, 0
    %11 = vsyncpa [#allocation6], 0
    %s12 = scalar_lea.sflag [#allocation6], 1
    %13 = vsyncpa %s12, 0
    loop: start=0, step=1, limit=12
    $region2: #{forward.1} parent=1 // loop_pre_header
      _
    $region3: #{forward.1} parent=1 // loop_header
      %s15 = sphi 0, %s19
      %p16 = scmp.ge.s32.totalorder %s15, 12
      %s22 = sphi 0, %s34
      %s23 = sphi 0, %s30
      %s24 = sphi 0, %s22
      %s25 = sphi 0, %s23
      %s26 = sphi 0, %s24
      %s27 = sphi 0, %s25
      %s37 = sphi 0, %s39
      %s40 = sphi 0, %s37
      %s41 = sphi 0, %s40
      %s57 = sphi 0, %s41
      %s63 = sphi 0, %s65
      %s66 = sphi 0, %s63
      %s67 = sphi 0, %s66
      %s83 = sphi 0, %s67
      %s89 = sphi 0, %s91
      %s92 = sphi 0, %s89
      %s93 = sphi 0, %s92
      %s109 = sphi 0, %s93
      %s115 = sphi 0, %s117
      %s118 = sphi 0, %s115
      %s119 = sphi 0, %s118
      %s135 = sphi 0, %s119
    $region4: #{forward.1} parent=1 // loop_header_branch
      %18 = sbr.rel (%p16) target = $region8
    $region5: #{forward.1} parent=1 // loop_body
      %s20 = ssub.s32 %s15, 1
      %s21 = ssub.s32 %s15, 2
      %s28 = sadd.s32 1, %s23
      %p29 = scmp.ge.s32.totalorder %s28, 5
      %s30 = scalar_select %p29, 0, %s28
      %s31 = sadd.s32 1, %s22
      %s32 = scalar_select %p29, %s31, %s22
      %p33 = scmp.ge.s32.totalorder %s32, 2
      %s34 = scalar_select %p33, 0, %s32
      %s35 = ssub.s32 %s22, %s34
      %p36 = scmp.eq.s32.totalorder %s35, 0
      %s38 = sadd.s32 %s37, 1
      %s39 = scalar_select %p36, %s37, %s38
      %p42 = pneg %p36
      %p43 = scmp.eq.s32.totalorder %s15, 9
      %p44 = por %p42, %p43
      %p45 = scmp.ne.s32.totalorder %s37, %s40
      %p46 = scmp.eq.s32.totalorder %s15, 0
      %p47 = por %p45, %p46
      %p48 = scmp.ne.s32.totalorder %s37, %s40
      %p49 = scmp.eq.s32.totalorder %s20, 9
      %p50 = por %p48, %p49
      %p51 = scmp.ne.s32.totalorder %s40, %s41
      %p52 = scmp.eq.s32.totalorder %s20, 0
      %p53 = por %p51, %p52
      %p54 = scmp.ne.s32.totalorder %s40, %s41
      %p55 = scmp.eq.s32.totalorder %s21, 9
      %p56 = por %p54, %p55
      %p58 = scmp.ne.s32.totalorder %s41, %s57
      %p59 = scmp.eq.s32.totalorder %s21, 0
      %p60 = por %p58, %p59
      %s61 = ssub.s32 %s23, %s30
      %p62 = scmp.eq.s32.totalorder %s61, 0
      %s64 = sadd.s32 %s63, 1
      %s65 = scalar_select %p62, %s63, %s64
      %p68 = pneg %p62
      %p69 = scmp.eq.s32.totalorder %s15, 9
      %p70 = por %p68, %p69
      %p71 = scmp.ne.s32.totalorder %s63, %s66
      %p72 = scmp.eq.s32.totalorder %s15, 0
      %p73 = por %p71, %p72
      %p74 = scmp.ne.s32.totalorder %s63, %s66
      %p75 = scmp.eq.s32.totalorder %s20, 9
      %p76 = por %p74, %p75
      %p77 = scmp.ne.s32.totalorder %s66, %s67
      %p78 = scmp.eq.s32.totalorder %s20, 0
      %p79 = por %p77, %p78
      %p80 = scmp.ne.s32.totalorder %s66, %s67
      %p81 = scmp.eq.s32.totalorder %s21, 9
      %p82 = por %p80, %p81
      %p84 = scmp.ne.s32.totalorder %s67, %s83
      %p85 = scmp.eq.s32.totalorder %s21, 0
      %p86 = por %p84, %p85
      %s87 = ssub.s32 %s23, %s30
      %p88 = scmp.eq.s32.totalorder %s87, 0
      %s90 = sadd.s32 %s89, 1
      %s91 = scalar_select %p88, %s89, %s90
      %p94 = pneg %p88
      %p95 = scmp.eq.s32.totalorder %s15, 9
      %p96 = por %p94, %p95
      %p97 = scmp.ne.s32.totalorder %s89, %s92
      %p98 = scmp.eq.s32.totalorder %s15, 0
      %p99 = por %p97, %p98
      %p100 = scmp.ne.s32.totalorder %s89, %s92
      %p101 = scmp.eq.s32.totalorder %s20, 9
      %p102 = por %p100, %p101
      %p103 = scmp.ne.s32.totalorder %s92, %s93
      %p104 = scmp.eq.s32.totalorder %s20, 0
      %p105 = por %p103, %p104
      %p106 = scmp.ne.s32.totalorder %s92, %s93
      %p107 = scmp.eq.s32.totalorder %s21, 9
      %p108 = por %p106, %p107
      %p110 = scmp.ne.s32.totalorder %s93, %s109
      %p111 = scmp.eq.s32.totalorder %s21, 0
      %p112 = por %p110, %p111
      %s113 = ssub.s32 %s22, %s34
      %p114 = scmp.eq.s32.totalorder %s113, 0
      %s116 = sadd.s32 %s115, 1
      %s117 = scalar_select %p114, %s115, %s116
      %p120 = pneg %p114
      %p121 = scmp.eq.s32.totalorder %s15, 9
      %p122 = por %p120, %p121
      %p123 = scmp.ne.s32.totalorder %s115, %s118
      %p124 = scmp.eq.s32.totalorder %s15, 0
      %p125 = por %p123, %p124
      %p126 = scmp.ne.s32.totalorder %s115, %s118
      %p127 = scmp.eq.s32.totalorder %s20, 9
      %p128 = por %p126, %p127
      %p129 = scmp.ne.s32.totalorder %s118, %s119
      %p130 = scmp.eq.s32.totalorder %s20, 0
      %p131 = por %p129, %p130
      %p132 = scmp.ne.s32.totalorder %s118, %s119
      %p133 = scmp.eq.s32.totalorder %s21, 9
      %p134 = por %p132, %p133
      %p136 = scmp.ne.s32.totalorder %s119, %s135
      %p137 = scmp.eq.s32.totalorder %s21, 0
      %p138 = por %p136, %p137
      %p139 = scmp.le.s32.totalorder 1, %s15
      %p140 = scmp.lt.s32.totalorder %s15, 11
      %p141 = pnand %p139, %p140
      %p142 = pneg %p141
      // Predicated region
      $region9: #{forward.1} parent=5 // pred_check
        _
      $region10: #{forward.1} parent=5 // pred_check_branch
        %144 = sbr.rel (%p141) target = $region12
      $region11: #{forward.1} parent=5 // pred_region
        %s145 = ssub.s32 %s15, 1
      $region12: #{forward.1} parent=5 // pred_fallthru
        _
      %p146 = scmp.lt.s32.totalorder %s15, 10
      // Predicated region
      $region13: #{forward.1} parent=5 // pred_check
        %p147 = pneg %p146
      $region14: #{forward.1} parent=5 // pred_check_branch
        %149 = sbr.rel (%p147) target = $region16
      $region15: #{forward.1} parent=5 // pred_region
        // Predicated region
        $region17: #{forward.1} parent=15 // pred_check
          %p150 = pneg %p47
        $region18: #{forward.1} parent=15 // pred_check_branch
          %152 = sbr.rel (%p150) target = $region20
        $region19: #{forward.1} parent=15 // pred_region
          %s153 = smul.u32 14, %s22
          %p154 = scmp.lt.s32.totalorder %s153, 27
          %s155 = scalar_select %p154, %s153, 27
          %s156 = smul.addr %s155, 4
          %s157 = smul.addr %s156, 4
          %s158 = scalar_lea.vmem %s0, %s157
          %s159 = smul.u32 14, %s22
        $region20: #{forward.1} parent=15 // pred_fallthru
          _
        // Predicated region
        $region21: #{forward.1} parent=15 // pred_check
          %p160 = pneg %p73
        $region22: #{forward.1} parent=15 // pred_check_branch
          %162 = sbr.rel (%p160) target = $region24
        $region23: #{forward.1} parent=15 // pred_region
          %s163 = sand.u32 %s63, 1
          %s164 = scalar_lea.sflag [#allocation4], %s163
          %s165 = sand.u32 %s63, 1
          %s166 = smul.addr %s165, 1024
          %s167 = scalar_lea.vmem [#allocation3], %s166
          %s169 = ssub.s32 16384, 16384
          %170 = vsyncadd %s164, %s169
          %s171 = smul.addr %s23, 256
          %s172 = smul.addr %s171, 64
          %s173 = scalar_lea.hbm %s1, %s172
          %s174 = sshll.u32 %s167, 4
          %s175 = int_to_ptr.vmem [resolvable:$true] %s174
          %180 = dma.hbm_to_vmem [thread:$0]  %s173, 16384, %s175, %s164, 256, 256, 16
        $region24: #{forward.1} parent=15 // pred_fallthru
          _
        // Predicated region
        $region25: #{forward.1} parent=15 // pred_check
          %p181 = pneg %p99
        $region26: #{forward.1} parent=15 // pred_check_branch
          %183 = sbr.rel (%p181) target = $region28
        $region27: #{forward.1} parent=15 // pred_region
          %s184 = sand.u32 %s89, 1
          %s185 = scalar_lea.sflag [#allocation6], %s184
          %s186 = sand.u32 %s89, 1
          %s187 = smul.addr %s186, 4
          %s188 = scalar_lea.vmem [#allocation5], %s187
          %s190 = ssub.s32 64, 64
          %191 = vsyncadd %s185, %s190
          %s192 = smul.addr %s23, 4
          %s193 = smul.addr %s192, 16
          %s194 = scalar_lea.hbm %s2, %s193
          %s196 = sshll.u32 %s188, 4
          %s197 = int_to_ptr.vmem [resolvable:$true] %s196
          %199 = dma.hbm_to_vmem [thread:$0]  %s194, 64, %s197, %s185
        $region28: #{forward.1} parent=15 // pred_fallthru
          _
      $region16: #{forward.1} parent=5 // pred_fallthru
        _
      %p200 = scmp.le.s32.totalorder 1, %s15
      %p201 = scmp.lt.s32.totalorder %s15, 11
      %p202 = pnand %p200, %p201
      %p203 = pneg %p202
      // Predicated region
      $region29: #{forward.1} parent=5 // pred_check
        _
      $region30: #{forward.1} parent=5 // pred_check_branch
        %205 = sbr.rel (%p202) target = $region32
      $region31: #{forward.1} parent=5 // pred_region
        %s206 = ssub.s32 %s15, 1
        %s207 = sand.u32 %s66, 1
        %s208 = scalar_lea.sflag [#allocation4], %s207
        %s209 = sand.u32 %s66, 1
        %s210 = smul.addr %s209, 1024
        %s211 = scalar_lea.vmem [#allocation3], %s210
        // Predicated region
        $region33: #{forward.1} parent=31 // pred_check
          %p212 = pneg %p79
        $region34: #{forward.1} parent=31 // pred_check_branch
          %214 = sbr.rel (%p212) target = $region36
        $region35: #{forward.1} parent=31 // pred_region
          %215 = dma.done %s208, 16384
        $region36: #{forward.1} parent=31 // pred_fallthru
          _
        %s216 = sand.u32 %s92, 1
        %s217 = scalar_lea.sflag [#allocation6], %s216
        %s218 = sand.u32 %s92, 1
        %s219 = smul.addr %s218, 4
        %s220 = scalar_lea.vmem [#allocation5], %s219
        // Predicated region
        $region37: #{forward.1} parent=31 // pred_check
          %p221 = pneg %p105
        $region38: #{forward.1} parent=31 // pred_check_branch
          %223 = sbr.rel (%p221) target = $region40
        $region39: #{forward.1} parent=31 // pred_region
          %224 = dma.done %s217, 64
        $region40: #{forward.1} parent=31 // pred_fallthru
          _
        %s225 = smul.u32 14, %s24
        %p226 = scmp.lt.s32.totalorder %s225, 27
        %s227 = scalar_select %p226, %s225, 27
        %s228 = smul.addr %s227, 4
        %s229 = smul.addr %s228, 4
        %s230 = scalar_lea.vmem %s0, %s229
        %p231 = pneg %p53
        %p232 = pneg %p50
        %s233 = sand.u32 %s66, 1
        %s234 = scalar_lea.sflag [#allocation4], %s233
        %s235 = sand.u32 %s66, 1
        %s236 = smul.addr %s235, 1024
        %s237 = scalar_lea.vmem [#allocation3], %s236
        %p238 = pneg %p79
        %p239 = pneg %p76
        %s240 = sand.u32 %s92, 1
        %s241 = scalar_lea.sflag [#allocation6], %s240
        %s242 = sand.u32 %s92, 1
        %s243 = smul.addr %s242, 4
        %s244 = scalar_lea.vmem [#allocation5], %s243
        %p245 = pneg %p105
        %p246 = pneg %p102
        %p247 = pneg %p131
        %p248 = pneg %p128
        %s249 = smul.u32 14, %s24
        %p250 = scmp.lt.s32.totalorder %s249, 27
        %s251 = scalar_select %p250, %s249, 27
        %s252 = smul.addr %s251, 4
        %s253 = smul.addr %s252, 8
        %s254 = scalar_lea.vmem %s3, %s253
        %s255 = smul.u32 14, %s24
        %p256 = scmp.lt.s32.totalorder %s255, 27
        %s257 = scalar_select %p256, %s255, 27
        %s258 = smul.addr %s257, 4
        %s259 = smul.addr %s258, 4
        %s260 = scalar_lea.vmem %s0, %s259
        %s261 = smul.u32 14, %s24
        %s262 = smul.u32 14, %s24
        %p263 = scmp.lt.s32.totalorder %s262, 27
        %s264 = scalar_select %p263, %s262, 27
        %s265 = smul.addr %s264, 4
        %s266 = smul.addr %s265, 8
        %s267 = scalar_lea.vmem %s3, %s266
        %s268 = smul.u32 14, %s24
        %p269 = scmp.eq.s32.totalorder %s25, 0
        // Predicated region
        $region41: #{forward.1} parent=31 // pred_check
          %p270 = pneg %p269
        $region42: #{forward.1} parent=31 // pred_check_branch
          %272 = sbr.rel (%p270) target = $region44
        $region43: #{forward.1} parent=31 // pred_region
          %v273 = vld [vmem:[%s260] sm:$0xff]
          %v274 = vld [vmem:[%s260 + $0x8] sm:$0xff]
          %v275 = vld [vmem:[%s260 + $0x10] sm:$0xff]
          %v276 = vld [vmem:[%s260 + $0x18] sm:$0xff]
          %v277 = vld [vmem:[%s260 + $0x20] sm:$0xff]
          %v278 = vld [vmem:[%s260 + $0x28] sm:$0xff]
          %v279 = vld [vmem:[%s260 + $0x30] sm:$0xff]
          %v280 = vld [vmem:[%s260 + $0x38] sm:$0xff]
          %v281 = vld [vmem:[%s260 + $0x40] sm:$0xff]
          %v282 = vld [vmem:[%s260 + $0x48] sm:$0xff]
          %v283 = vld [vmem:[%s260 + $0x50] sm:$0xff]
          %v284 = vld [vmem:[%s260 + $0x58] sm:$0xff]
          %v285 = vld [vmem:[%s260 + $0x60] sm:$0xff]
          %v286 = vld [vmem:[%s260 + $0x68] sm:$0xff]
          %v287 = vld [vmem:[%s260 + $0x70] sm:$0xff]
          %v288 = vld [vmem:[%s260 + $0x78] sm:$0xff]
          %v289 = vld [vmem:[%s260 + $0x80] sm:$0xff]
          %v290 = vld [vmem:[%s260 + $0x88] sm:$0xff]
          %v291 = vld [vmem:[%s260 + $0x90] sm:$0xff]
          %v292 = vld [vmem:[%s260 + $0x98] sm:$0xff]
          %v293 = vld [vmem:[%s260 + $0xa0] sm:$0xff]
          %v294 = vld [vmem:[%s260 + $0xa8] sm:$0xff]
          %v295 = vld [vmem:[%s260 + $0xb0] sm:$0xff]
          %v296 = vld [vmem:[%s260 + $0xb8] sm:$0xff]
          %v297 = vld [vmem:[%s260 + $0xc0] sm:$0xff]
          %v298 = vld [vmem:[%s260 + $0xc8] sm:$0xff]
          %v299 = vld [vmem:[%s260 + $0xd0] sm:$0xff]
          %v300 = vld [vmem:[%s260 + $0xd8] sm:$0xff]
          %301 = vst [vmem:[#allocation2] sm:$0xff] %v273
          %302 = vst [vmem:[#allocation2 + $0x8] sm:$0xff] %v274
          %303 = vst [vmem:[#allocation2 + $0x10] sm:$0xff] %v275
          %304 = vst [vmem:[#allocation2 + $0x18] sm:$0xff] %v276
          %305 = vst [vmem:[#allocation2 + $0x20] sm:$0xff] %v277
          %306 = vst [vmem:[#allocation2 + $0x28] sm:$0xff] %v278
          %307 = vst [vmem:[#allocation2 + $0x30] sm:$0xff] %v279
          %308 = vst [vmem:[#allocation2 + $0x38] sm:$0xff] %v280
          %309 = vst [vmem:[#allocation2 + $0x40] sm:$0xff] %v281
          %310 = vst [vmem:[#allocation2 + $0x48] sm:$0xff] %v282
          %311 = vst [vmem:[#allocation2 + $0x50] sm:$0xff] %v283
          %312 = vst [vmem:[#allocation2 + $0x58] sm:$0xff] %v284
          %313 = vst [vmem:[#allocation2 + $0x60] sm:$0xff] %v285
          %314 = vst [vmem:[#allocation2 + $0x68] sm:$0xff] %v286
          %315 = vst [vmem:[#allocation2 + $0x70] sm:$0xff] %v287
          %316 = vst [vmem:[#allocation2 + $0x78] sm:$0xff] %v288
          %317 = vst [vmem:[#allocation2 + $0x80] sm:$0xff] %v289
          %318 = vst [vmem:[#allocation2 + $0x88] sm:$0xff] %v290
          %319 = vst [vmem:[#allocation2 + $0x90] sm:$0xff] %v291
          %320 = vst [vmem:[#allocation2 + $0x98] sm:$0xff] %v292
          %321 = vst [vmem:[#allocation2 + $0xa0] sm:$0xff] %v293
          %322 = vst [vmem:[#allocation2 + $0xa8] sm:$0xff] %v294
          %323 = vst [vmem:[#allocation2 + $0xb0] sm:$0xff] %v295
          %324 = vst [vmem:[#allocation2 + $0xb8] sm:$0xff] %v296
          %325 = vst [vmem:[#allocation2 + $0xc0] sm:$0xff] %v297
          %326 = vst [vmem:[#allocation2 + $0xc8] sm:$0xff] %v298
          %327 = vst [vmem:[#allocation2 + $0xd0] sm:$0xff] %v299
          %328 = vst [vmem:[#allocation2 + $0xd8] sm:$0xff] %v300
        $region44: #{forward.1} parent=31 // pred_fallthru
          _
        %v329 = vld [vmem:[#allocation2] sm:$0xff]
        %v330 = vld [vmem:[#allocation2 + $0x8] sm:$0xff]
        %v331 = vld [vmem:[#allocation2 + $0x10] sm:$0xff]
        %v332 = vld [vmem:[#allocation2 + $0x18] sm:$0xff]
        %v333 = vld [vmem:[#allocation2 + $0x20] sm:$0xff]
        %v334 = vld [vmem:[#allocation2 + $0x28] sm:$0xff]
        %v335 = vld [vmem:[#allocation2 + $0x30] sm:$0xff]
        %v336 = vld [vmem:[#allocation2 + $0x38] sm:$0xff]
        %v337 = vld [vmem:[#allocation2 + $0x40] sm:$0xff]
        %v338 = vld [vmem:[#allocation2 + $0x48] sm:$0xff]
        %v339 = vld [vmem:[#allocation2 + $0x50] sm:$0xff]
        %v340 = vld [vmem:[#allocation2 + $0x58] sm:$0xff]
        %v341 = vld [vmem:[#allocation2 + $0x60] sm:$0xff]
        %v342 = vld [vmem:[#allocation2 + $0x68] sm:$0xff]
        %v343 = vld [vmem:[#allocation2 + $0x70] sm:$0xff]
        %v344 = vld [vmem:[#allocation2 + $0x78] sm:$0xff]
        %v345 = vld [vmem:[#allocation2 + $0x80] sm:$0xff]
        %v346 = vld [vmem:[#allocation2 + $0x88] sm:$0xff]
        %v347 = vld [vmem:[#allocation2 + $0x90] sm:$0xff]
        %v348 = vld [vmem:[#allocation2 + $0x98] sm:$0xff]
        %v349 = vld [vmem:[#allocation2 + $0xa0] sm:$0xff]
        %v350 = vld [vmem:[#allocation2 + $0xa8] sm:$0xff]
        %v351 = vld [vmem:[#allocation2 + $0xb0] sm:$0xff]
        %v352 = vld [vmem:[#allocation2 + $0xb8] sm:$0xff]
        %v353 = vld [vmem:[#allocation2 + $0xc0] sm:$0xff]
        %v354 = vld [vmem:[#allocation2 + $0xc8] sm:$0xff]
        %v355 = vld [vmem:[#allocation2 + $0xd0] sm:$0xff]
        %v356 = vld [vmem:[#allocation2 + $0xd8] sm:$0xff]
        %v357 = vld [vmem:[%s211] sm:$0xff]
        %v358 = vld [vmem:[%s211 + $0x8] sm:$0xff]
        %v359 = vld [vmem:[%s211 + $0x10] sm:$0xff]
        %v360 = vld [vmem:[%s211 + $0x18] sm:$0xff]
        %v361 = vld [vmem:[%s211 + $0x20] sm:$0xff]
        %v362 = vld [vmem:[%s211 + $0x28] sm:$0xff]
        %v363 = vld [vmem:[%s211 + $0x30] sm:$0xff]
        %v364 = vld [vmem:[%s211 + $0x38] sm:$0xff]
        %v365 = vld [vmem:[%s211 + $0x40] sm:$0xff]
        %v366 = vld [vmem:[%s211 + $0x48] sm:$0xff]
        %v367 = vld [vmem:[%s211 + $0x50] sm:$0xff]
        %v368 = vld [vmem:[%s211 + $0x58] sm:$0xff]
        %v369 = vld [vmem:[%s211 + $0x60] sm:$0xff]
        %v370 = vld [vmem:[%s211 + $0x68] sm:$0xff]
        %v371 = vld [vmem:[%s211 + $0x70] sm:$0xff]
        %v372 = vld [vmem:[%s211 + $0x78] sm:$0xff]
        %v373 = vld [vmem:[%s211 + $0x80] sm:$0xff]
        %v374 = vld [vmem:[%s211 + $0x88] sm:$0xff]
        %v375 = vld [vmem:[%s211 + $0x90] sm:$0xff]
        %v376 = vld [vmem:[%s211 + $0x98] sm:$0xff]
        %v377 = vld [vmem:[%s211 + $0xa0] sm:$0xff]
        %v378 = vld [vmem:[%s211 + $0xa8] sm:$0xff]
        %v379 = vld [vmem:[%s211 + $0xb0] sm:$0xff]
        %v380 = vld [vmem:[%s211 + $0xb8] sm:$0xff]
        %v381 = vld [vmem:[%s211 + $0xc0] sm:$0xff]
        %v382 = vld [vmem:[%s211 + $0xc8] sm:$0xff]
        %v383 = vld [vmem:[%s211 + $0xd0] sm:$0xff]
        %v384 = vld [vmem:[%s211 + $0xd8] sm:$0xff]
        %v385 = vld [vmem:[%s211 + $0xe0] sm:$0xff]
        %v386 = vld [vmem:[%s211 + $0xe8] sm:$0xff]
        %v387 = vld [vmem:[%s211 + $0xf0] sm:$0xff]
        %v388 = vld [vmem:[%s211 + $0xf8] sm:$0xff]
        %v389 = vld [vmem:[%s211 + $0x100] sm:$0xff]
        %v390 = vld [vmem:[%s211 + $0x108] sm:$0xff]
        %v391 = vld [vmem:[%s211 + $0x110] sm:$0xff]
        %v392 = vld [vmem:[%s211 + $0x118] sm:$0xff]
        %v393 = vld [vmem:[%s211 + $0x120] sm:$0xff]
        %v394 = vld [vmem:[%s211 + $0x128] sm:$0xff]
        %v395 = vld [vmem:[%s211 + $0x130] sm:$0xff]
        %v396 = vld [vmem:[%s211 + $0x138] sm:$0xff]
        %v397 = vld [vmem:[%s211 + $0x140] sm:$0xff]
        %v398 = vld [vmem:[%s211 + $0x148] sm:$0xff]
        %v399 = vld [vmem:[%s211 + $0x150] sm:$0xff]
        %v400 = vld [vmem:[%s211 + $0x158] sm:$0xff]
        %v401 = vld [vmem:[%s211 + $0x160] sm:$0xff]
        %v402 = vld [vmem:[%s211 + $0x168] sm:$0xff]
        %v403 = vld [vmem:[%s211 + $0x170] sm:$0xff]
        %v404 = vld [vmem:[%s211 + $0x178] sm:$0xff]
        %v405 = vld [vmem:[%s211 + $0x180] sm:$0xff]
        %v406 = vld [vmem:[%s211 + $0x188] sm:$0xff]
        %v407 = vld [vmem:[%s211 + $0x190] sm:$0xff]
        %v408 = vld [vmem:[%s211 + $0x198] sm:$0xff]
        %v409 = vld [vmem:[%s211 + $0x1a0] sm:$0xff]
        %v410 = vld [vmem:[%s211 + $0x1a8] sm:$0xff]
        %v411 = vld [vmem:[%s211 + $0x1b0] sm:$0xff]
        %v412 = vld [vmem:[%s211 + $0x1b8] sm:$0xff]
        %v413 = vld [vmem:[%s211 + $0x1c0] sm:$0xff]
        %v414 = vld [vmem:[%s211 + $0x1c8] sm:$0xff]
        %v415 = vld [vmem:[%s211 + $0x1d0] sm:$0xff]
        %v416 = vld [vmem:[%s211 + $0x1d8] sm:$0xff]
        %v417 = vld [vmem:[%s211 + $0x1e0] sm:$0xff]
        %v418 = vld [vmem:[%s211 + $0x1e8] sm:$0xff]
        %v419 = vld [vmem:[%s211 + $0x1f0] sm:$0xff]
        %v420 = vld [vmem:[%s211 + $0x1f8] sm:$0xff]
        %v421 = vld [vmem:[%s211 + $0x200] sm:$0xff]
        %v422 = vld [vmem:[%s211 + $0x208] sm:$0xff]
        %v423 = vld [vmem:[%s211 + $0x210] sm:$0xff]
        %v424 = vld [vmem:[%s211 + $0x218] sm:$0xff]
        %v425 = vld [vmem:[%s211 + $0x220] sm:$0xff]
        %v426 = vld [vmem:[%s211 + $0x228] sm:$0xff]
        %v427 = vld [vmem:[%s211 + $0x230] sm:$0xff]
        %v428 = vld [vmem:[%s211 + $0x238] sm:$0xff]
        %v429 = vld [vmem:[%s211 + $0x240] sm:$0xff]
        %v430 = vld [vmem:[%s211 + $0x248] sm:$0xff]
        %v431 = vld [vmem:[%s211 + $0x250] sm:$0xff]
        %v432 = vld [vmem:[%s211 + $0x258] sm:$0xff]
        %v433 = vld [vmem:[%s211 + $0x260] sm:$0xff]
        %v434 = vld [vmem:[%s211 + $0x268] sm:$0xff]
        %v435 = vld [vmem:[%s211 + $0x270] sm:$0xff]
        %v436 = vld [vmem:[%s211 + $0x278] sm:$0xff]
        %v437 = vld [vmem:[%s211 + $0x280] sm:$0xff]
        %v438 = vld [vmem:[%s211 + $0x288] sm:$0xff]
        %v439 = vld [vmem:[%s211 + $0x290] sm:$0xff]
        %v440 = vld [vmem:[%s211 + $0x298] sm:$0xff]
        %v441 = vld [vmem:[%s211 + $0x2a0] sm:$0xff]
        %v442 = vld [vmem:[%s211 + $0x2a8] sm:$0xff]
        %v443 = vld [vmem:[%s211 + $0x2b0] sm:$0xff]
        %v444 = vld [vmem:[%s211 + $0x2b8] sm:$0xff]
        %v445 = vld [vmem:[%s211 + $0x2c0] sm:$0xff]
        %v446 = vld [vmem:[%s211 + $0x2c8] sm:$0xff]
        %v447 = vld [vmem:[%s211 + $0x2d0] sm:$0xff]
        %v448 = vld [vmem:[%s211 + $0x2d8] sm:$0xff]
        %v449 = vld [vmem:[%s211 + $0x2e0] sm:$0xff]
        %v450 = vld [vmem:[%s211 + $0x2e8] sm:$0xff]
        %v451 = vld [vmem:[%s211 + $0x2f0] sm:$0xff]
        %v452 = vld [vmem:[%s211 + $0x2f8] sm:$0xff]
        %v453 = vld [vmem:[%s211 + $0x300] sm:$0xff]
        %v454 = vld [vmem:[%s211 + $0x308] sm:$0xff]
        %v455 = vld [vmem:[%s211 + $0x310] sm:$0xff]
        %v456 = vld [vmem:[%s211 + $0x318] sm:$0xff]
        %v457 = vld [vmem:[%s211 + $0x320] sm:$0xff]
        %v458 = vld [vmem:[%s211 + $0x328] sm:$0xff]
        %v459 = vld [vmem:[%s211 + $0x330] sm:$0xff]
        %v460 = vld [vmem:[%s211 + $0x338] sm:$0xff]
        %v461 = vld [vmem:[%s211 + $0x340] sm:$0xff]
        %v462 = vld [vmem:[%s211 + $0x348] sm:$0xff]
        %v463 = vld [vmem:[%s211 + $0x350] sm:$0xff]
        %v464 = vld [vmem:[%s211 + $0x358] sm:$0xff]
        %v465 = vld [vmem:[%s211 + $0x360] sm:$0xff]
        %v466 = vld [vmem:[%s211 + $0x368] sm:$0xff]
        %v467 = vld [vmem:[%s211 + $0x370] sm:$0xff]
        %v468 = vld [vmem:[%s211 + $0x378] sm:$0xff]
        %v469 = vld [vmem:[%s211 + $0x380] sm:$0xff]
        %v470 = vld [vmem:[%s211 + $0x388] sm:$0xff]
        %v471 = vld [vmem:[%s211 + $0x390] sm:$0xff]
        %v472 = vld [vmem:[%s211 + $0x398] sm:$0xff]
        %v473 = vld [vmem:[%s211 + $0x3a0] sm:$0xff]
        %v474 = vld [vmem:[%s211 + $0x3a8] sm:$0xff]
        %v475 = vld [vmem:[%s211 + $0x3b0] sm:$0xff]
        %v476 = vld [vmem:[%s211 + $0x3b8] sm:$0xff]
        %v477 = vld [vmem:[%s211 + $0x3c0] sm:$0xff]
        %v478 = vld [vmem:[%s211 + $0x3c8] sm:$0xff]
        %v479 = vld [vmem:[%s211 + $0x3d0] sm:$0xff]
        %v480 = vld [vmem:[%s211 + $0x3d8] sm:$0xff]
        %v481 = vld [vmem:[%s211 + $0x3e0] sm:$0xff]
        %v482 = vld [vmem:[%s211 + $0x3e8] sm:$0xff]
        %v483 = vld [vmem:[%s211 + $0x3f0] sm:$0xff]
        %v484 = vld [vmem:[%s211 + $0x3f8] sm:$0xff]
        %v485 = vld [vmem:[%s220] sm:$0xf]
        %v487 = vlaneseq
        %v488 = vshrl.u32 %v487, 7
        %v489 = vsub.s32 0, %v488
        %v490 = vrot.slane %v485, %v489
        %v491 = vlaneseq
        %v492 = vshrl.u32 %v491, 7
        %v493 = vsub.s32 1, %v492
        %v494 = vrot.slane %v485, %v493
        %v495 = vlaneseq
        %v496 = vshrl.u32 %v495, 7
        %v497 = vsub.s32 2, %v496
        %v498 = vrot.slane %v485, %v497
        %v499 = vlaneseq
        %v500 = vshrl.u32 %v499, 7
        %v501 = vsub.s32 3, %v500
        %v502 = vrot.slane %v485, %v501
        %v535 = vunpack.c.l.b16 %v329
        %v536 = vunpack.c.h.b16 %v329
        %v537 = vunpack.c.l.b16 %v330
        %v538 = vunpack.c.h.b16 %v330
        %v539 = vunpack.c.l.b16 %v331
        %v540 = vunpack.c.h.b16 %v331
        %v541 = vunpack.c.l.b16 %v332
        %v542 = vunpack.c.h.b16 %v332
        %v543 = vunpack.c.l.b16 %v333
        %v544 = vunpack.c.h.b16 %v333
        %v545 = vunpack.c.l.b16 %v334
        %v546 = vunpack.c.h.b16 %v334
        %v547 = vunpack.c.l.b16 %v335
        %v548 = vunpack.c.h.b16 %v335
        %v549 = vunpack.c.l.b16 %v336
        %v550 = vunpack.c.h.b16 %v336
        %v551 = vunpack.c.l.b16 %v337
        %v552 = vunpack.c.h.b16 %v337
        %v553 = vunpack.c.l.b16 %v338
        %v554 = vunpack.c.h.b16 %v338
        %v555 = vunpack.c.l.b16 %v339
        %v556 = vunpack.c.h.b16 %v339
        %v557 = vunpack.c.l.b16 %v340
        %v558 = vunpack.c.h.b16 %v340
        %v559 = vunpack.c.l.b16 %v341
        %v560 = vunpack.c.h.b16 %v341
        %v561 = vunpack.c.l.b16 %v342
        %v562 = vunpack.c.h.b16 %v342
        %v563 = vunpack.c.l.b16 %v343
        %v564 = vunpack.c.h.b16 %v343
        %v565 = vunpack.c.l.b16 %v344
        %v566 = vunpack.c.h.b16 %v344
        %v567 = vunpack.c.l.b16 %v345
        %v568 = vunpack.c.h.b16 %v345
        %v569 = vunpack.c.l.b16 %v346
        %v570 = vunpack.c.h.b16 %v346
        %v571 = vunpack.c.l.b16 %v347
        %v572 = vunpack.c.h.b16 %v347
        %v573 = vunpack.c.l.b16 %v348
        %v574 = vunpack.c.h.b16 %v348
        %v575 = vunpack.c.l.b16 %v349
        %v576 = vunpack.c.h.b16 %v349
        %v577 = vunpack.c.l.b16 %v350
        %v578 = vunpack.c.h.b16 %v350
        %v579 = vunpack.c.l.b16 %v351
        %v580 = vunpack.c.h.b16 %v351
        %v581 = vunpack.c.l.b16 %v352
        %v582 = vunpack.c.h.b16 %v352
        %v583 = vunpack.c.l.b16 %v353
        %v584 = vunpack.c.h.b16 %v353
        %v585 = vunpack.c.l.b16 %v354
        %v586 = vunpack.c.h.b16 %v354
        %v587 = vunpack.c.l.b16 %v355
        %v588 = vunpack.c.h.b16 %v355
        %v589 = vunpack.c.l.b16 %v356
        %v590 = vunpack.c.h.b16 %v356
        %v591 = vpack.c.b16 %v539, %v535
        %v592 = vpack.c.b16 %v540, %v536
        %v593 = vpack.c.b16 %v541, %v537
        %v594 = vpack.c.b16 %v542, %v538
        %v595 = vpack.c.b16 %v547, %v543
        %v596 = vpack.c.b16 %v548, %v544
        %v597 = vpack.c.b16 %v549, %v545
        %v598 = vpack.c.b16 %v550, %v546
        %v599 = vpack.c.b16 %v555, %v551
        %v600 = vpack.c.b16 %v556, %v552
        %v601 = vpack.c.b16 %v557, %v553
        %v602 = vpack.c.b16 %v558, %v554
        %v603 = vpack.c.b16 %v563, %v559
        %v604 = vpack.c.b16 %v564, %v560
        %v605 = vpack.c.b16 %v565, %v561
        %v606 = vpack.c.b16 %v566, %v562
        %v607 = vpack.c.b16 %v571, %v567
        %v608 = vpack.c.b16 %v572, %v568
        %v609 = vpack.c.b16 %v573, %v569
        %v610 = vpack.c.b16 %v574, %v570
        %v611 = vpack.c.b16 %v579, %v575
        %v612 = vpack.c.b16 %v580, %v576
        %v613 = vpack.c.b16 %v581, %v577
        %v614 = vpack.c.b16 %v582, %v578
        %v615 = vpack.c.b16 %v587, %v583
        %v616 = vpack.c.b16 %v588, %v584
        %v617 = vpack.c.b16 %v589, %v585
        %v618 = vpack.c.b16 %v590, %v586
        %v775 = vunpack.c.l.b16 %v357
        %v776 = vunpack.c.h.b16 %v357
        %v777 = vunpack.c.l.b16 %v358
        %v778 = vunpack.c.h.b16 %v358
        %v779 = vunpack.c.l.b16 %v359
        %v780 = vunpack.c.h.b16 %v359
        %v781 = vunpack.c.l.b16 %v360
        %v782 = vunpack.c.h.b16 %v360
        %v783 = vunpack.c.l.b16 %v361
        %v784 = vunpack.c.h.b16 %v361
        %v785 = vunpack.c.l.b16 %v362
        %v786 = vunpack.c.h.b16 %v362
        %v787 = vunpack.c.l.b16 %v363
        %v788 = vunpack.c.h.b16 %v363
        %v789 = vunpack.c.l.b16 %v364
        %v790 = vunpack.c.h.b16 %v364
        %v791 = vunpack.c.l.b16 %v365
        %v792 = vunpack.c.h.b16 %v365
        %v793 = vunpack.c.l.b16 %v366
        %v794 = vunpack.c.h.b16 %v366
        %v795 = vunpack.c.l.b16 %v367
        %v796 = vunpack.c.h.b16 %v367
        %v797 = vunpack.c.l.b16 %v368
        %v798 = vunpack.c.h.b16 %v368
        %v799 = vunpack.c.l.b16 %v369
        %v800 = vunpack.c.h.b16 %v369
        %v801 = vunpack.c.l.b16 %v370
        %v802 = vunpack.c.h.b16 %v370
        %v803 = vunpack.c.l.b16 %v371
        %v804 = vunpack.c.h.b16 %v371
        %v805 = vunpack.c.l.b16 %v372
        %v806 = vunpack.c.h.b16 %v372
        %v807 = vunpack.c.l.b16 %v373
        %v808 = vunpack.c.h.b16 %v373
        %v809 = vunpack.c.l.b16 %v374
        %v810 = vunpack.c.h.b16 %v374
        %v811 = vunpack.c.l.b16 %v375
        %v812 = vunpack.c.h.b16 %v375
        %v813 = vunpack.c.l.b16 %v376
        %v814 = vunpack.c.h.b16 %v376
        %v815 = vunpack.c.l.b16 %v377
        %v816 = vunpack.c.h.b16 %v377
        %v817 = vunpack.c.l.b16 %v378
        %v818 = vunpack.c.h.b16 %v378
        %v819 = vunpack.c.l.b16 %v379
        %v820 = vunpack.c.h.b16 %v379
        %v821 = vunpack.c.l.b16 %v380
        %v822 = vunpack.c.h.b16 %v380
        %v823 = vunpack.c.l.b16 %v381
        %v824 = vunpack.c.h.b16 %v381
        %v825 = vunpack.c.l.b16 %v382
        %v826 = vunpack.c.h.b16 %v382
        %v827 = vunpack.c.l.b16 %v383
        %v828 = vunpack.c.h.b16 %v383
        %v829 = vunpack.c.l.b16 %v384
        %v830 = vunpack.c.h.b16 %v384
        %v831 = vunpack.c.l.b16 %v385
        %v832 = vunpack.c.h.b16 %v385
        %v833 = vunpack.c.l.b16 %v386
        %v834 = vunpack.c.h.b16 %v386
        %v835 = vunpack.c.l.b16 %v387
        %v836 = vunpack.c.h.b16 %v387
        %v837 = vunpack.c.l.b16 %v388
        %v838 = vunpack.c.h.b16 %v388
        %v839 = vunpack.c.l.b16 %v389
        %v840 = vunpack.c.h.b16 %v389
        %v841 = vunpack.c.l.b16 %v390
        %v842 = vunpack.c.h.b16 %v390
        %v843 = vunpack.c.l.b16 %v391
        %v844 = vunpack.c.h.b16 %v391
        %v845 = vunpack.c.l.b16 %v392
        %v846 = vunpack.c.h.b16 %v392
        %v847 = vunpack.c.l.b16 %v393
        %v848 = vunpack.c.h.b16 %v393
        %v849 = vunpack.c.l.b16 %v394
        %v850 = vunpack.c.h.b16 %v394
        %v851 = vunpack.c.l.b16 %v395
        %v852 = vunpack.c.h.b16 %v395
        %v853 = vunpack.c.l.b16 %v396
        %v854 = vunpack.c.h.b16 %v396
        %v855 = vunpack.c.l.b16 %v397
        %v856 = vunpack.c.h.b16 %v397
        %v857 = vunpack.c.l.b16 %v398
        %v858 = vunpack.c.h.b16 %v398
        %v859 = vunpack.c.l.b16 %v399
        %v860 = vunpack.c.h.b16 %v399
        %v861 = vunpack.c.l.b16 %v400
        %v862 = vunpack.c.h.b16 %v400
        %v863 = vunpack.c.l.b16 %v401
        %v864 = vunpack.c.h.b16 %v401
        %v865 = vunpack.c.l.b16 %v402
        %v866 = vunpack.c.h.b16 %v402
        %v867 = vunpack.c.l.b16 %v403
        %v868 = vunpack.c.h.b16 %v403
        %v869 = vunpack.c.l.b16 %v404
        %v870 = vunpack.c.h.b16 %v404
        %v871 = vunpack.c.l.b16 %v405
        %v872 = vunpack.c.h.b16 %v405
        %v873 = vunpack.c.l.b16 %v406
        %v874 = vunpack.c.h.b16 %v406
        %v875 = vunpack.c.l.b16 %v407
        %v876 = vunpack.c.h.b16 %v407
        %v877 = vunpack.c.l.b16 %v408
        %v878 = vunpack.c.h.b16 %v408
        %v879 = vunpack.c.l.b16 %v409
        %v880 = vunpack.c.h.b16 %v409
        %v881 = vunpack.c.l.b16 %v410
        %v882 = vunpack.c.h.b16 %v410
        %v883 = vunpack.c.l.b16 %v411
        %v884 = vunpack.c.h.b16 %v411
        %v885 = vunpack.c.l.b16 %v412
        %v886 = vunpack.c.h.b16 %v412
        %v887 = vunpack.c.l.b16 %v413
        %v888 = vunpack.c.h.b16 %v413
        %v889 = vunpack.c.l.b16 %v414
        %v890 = vunpack.c.h.b16 %v414
        %v891 = vunpack.c.l.b16 %v415
        %v892 = vunpack.c.h.b16 %v415
        %v893 = vunpack.c.l.b16 %v416
        %v894 = vunpack.c.h.b16 %v416
        %v895 = vunpack.c.l.b16 %v417
        %v896 = vunpack.c.h.b16 %v417
        %v897 = vunpack.c.l.b16 %v418
        %v898 = vunpack.c.h.b16 %v418
        %v899 = vunpack.c.l.b16 %v419
        %v900 = vunpack.c.h.b16 %v419
        %v901 = vunpack.c.l.b16 %v420
        %v902 = vunpack.c.h.b16 %v420
        %v903 = vunpack.c.l.b16 %v421
        %v904 = vunpack.c.h.b16 %v421
        %v905 = vunpack.c.l.b16 %v422
        %v906 = vunpack.c.h.b16 %v422
        %v907 = vunpack.c.l.b16 %v423
        %v908 = vunpack.c.h.b16 %v423
        %v909 = vunpack.c.l.b16 %v424
        %v910 = vunpack.c.h.b16 %v424
        %v911 = vunpack.c.l.b16 %v425
        %v912 = vunpack.c.h.b16 %v425
        %v913 = vunpack.c.l.b16 %v426
        %v914 = vunpack.c.h.b16 %v426
        %v915 = vunpack.c.l.b16 %v427
        %v916 = vunpack.c.h.b16 %v427
        %v917 = vunpack.c.l.b16 %v428
        %v918 = vunpack.c.h.b16 %v428
        %v919 = vunpack.c.l.b16 %v429
        %v920 = vunpack.c.h.b16 %v429
        %v921 = vunpack.c.l.b16 %v430
        %v922 = vunpack.c.h.b16 %v430
        %v923 = vunpack.c.l.b16 %v431
        %v924 = vunpack.c.h.b16 %v431
        %v925 = vunpack.c.l.b16 %v432
        %v926 = vunpack.c.h.b16 %v432
        %v927 = vunpack.c.l.b16 %v433
        %v928 = vunpack.c.h.b16 %v433
        %v929 = vunpack.c.l.b16 %v434
        %v930 = vunpack.c.h.b16 %v434
        %v931 = vunpack.c.l.b16 %v435
        %v932 = vunpack.c.h.b16 %v435
        %v933 = vunpack.c.l.b16 %v436
        %v934 = vunpack.c.h.b16 %v436
        %v935 = vunpack.c.l.b16 %v437
        %v936 = vunpack.c.h.b16 %v437
        %v937 = vunpack.c.l.b16 %v438
        %v938 = vunpack.c.h.b16 %v438
        %v939 = vunpack.c.l.b16 %v439
        %v940 = vunpack.c.h.b16 %v439
        %v941 = vunpack.c.l.b16 %v440
        %v942 = vunpack.c.h.b16 %v440
        %v943 = vunpack.c.l.b16 %v441
        %v944 = vunpack.c.h.b16 %v441
        %v945 = vunpack.c.l.b16 %v442
        %v946 = vunpack.c.h.b16 %v442
        %v947 = vunpack.c.l.b16 %v443
        %v948 = vunpack.c.h.b16 %v443
        %v949 = vunpack.c.l.b16 %v444
        %v950 = vunpack.c.h.b16 %v444
        %v951 = vunpack.c.l.b16 %v445
        %v952 = vunpack.c.h.b16 %v445
        %v953 = vunpack.c.l.b16 %v446
        %v954 = vunpack.c.h.b16 %v446
        %v955 = vunpack.c.l.b16 %v447
        %v956 = vunpack.c.h.b16 %v447
        %v957 = vunpack.c.l.b16 %v448
        %v958 = vunpack.c.h.b16 %v448
        %v959 = vunpack.c.l.b16 %v449
        %v960 = vunpack.c.h.b16 %v449
        %v961 = vunpack.c.l.b16 %v450
        %v962 = vunpack.c.h.b16 %v450
        %v963 = vunpack.c.l.b16 %v451
        %v964 = vunpack.c.h.b16 %v451
        %v965 = vunpack.c.l.b16 %v452
        %v966 = vunpack.c.h.b16 %v452
        %v967 = vunpack.c.l.b16 %v453
        %v968 = vunpack.c.h.b16 %v453
        %v969 = vunpack.c.l.b16 %v454
        %v970 = vunpack.c.h.b16 %v454
        %v971 = vunpack.c.l.b16 %v455
        %v972 = vunpack.c.h.b16 %v455
        %v973 = vunpack.c.l.b16 %v456
        %v974 = vunpack.c.h.b16 %v456
        %v975 = vunpack.c.l.b16 %v457
        %v976 = vunpack.c.h.b16 %v457
        %v977 = vunpack.c.l.b16 %v458
        %v978 = vunpack.c.h.b16 %v458
        %v979 = vunpack.c.l.b16 %v459
        %v980 = vunpack.c.h.b16 %v459
        %v981 = vunpack.c.l.b16 %v460
        %v982 = vunpack.c.h.b16 %v460
        %v983 = vunpack.c.l.b16 %v461
        %v984 = vunpack.c.h.b16 %v461
        %v985 = vunpack.c.l.b16 %v462
        %v986 = vunpack.c.h.b16 %v462
        %v987 = vunpack.c.l.b16 %v463
        %v988 = vunpack.c.h.b16 %v463
        %v989 = vunpack.c.l.b16 %v464
        %v990 = vunpack.c.h.b16 %v464
        %v991 = vunpack.c.l.b16 %v465
        %v992 = vunpack.c.h.b16 %v465
        %v993 = vunpack.c.l.b16 %v466
        %v994 = vunpack.c.h.b16 %v466
        %v995 = vunpack.c.l.b16 %v467
        %v996 = vunpack.c.h.b16 %v467
        %v997 = vunpack.c.l.b16 %v468
        %v998 = vunpack.c.h.b16 %v468
        %v999 = vunpack.c.l.b16 %v469
        %v1000 = vunpack.c.h.b16 %v469
        %v1001 = vunpack.c.l.b16 %v470
        %v1002 = vunpack.c.h.b16 %v470
        %v1003 = vunpack.c.l.b16 %v471
        %v1004 = vunpack.c.h.b16 %v471
        %v1005 = vunpack.c.l.b16 %v472
        %v1006 = vunpack.c.h.b16 %v472
        %v1007 = vunpack.c.l.b16 %v473
        %v1008 = vunpack.c.h.b16 %v473
        %v1009 = vunpack.c.l.b16 %v474
        %v1010 = vunpack.c.h.b16 %v474
        %v1011 = vunpack.c.l.b16 %v475
        %v1012 = vunpack.c.h.b16 %v475
        %v1013 = vunpack.c.l.b16 %v476
        %v1014 = vunpack.c.h.b16 %v476
        %v1015 = vunpack.c.l.b16 %v477
        %v1016 = vunpack.c.h.b16 %v477
        %v1017 = vunpack.c.l.b16 %v478
        %v1018 = vunpack.c.h.b16 %v478
        %v1019 = vunpack.c.l.b16 %v479
        %v1020 = vunpack.c.h.b16 %v479
        %v1021 = vunpack.c.l.b16 %v480
        %v1022 = vunpack.c.h.b16 %v480
        %v1023 = vunpack.c.l.b16 %v481
        %v1024 = vunpack.c.h.b16 %v481
        %v1025 = vunpack.c.l.b16 %v482
        %v1026 = vunpack.c.h.b16 %v482
        %v1027 = vunpack.c.l.b16 %v483
        %v1028 = vunpack.c.h.b16 %v483
        %v1029 = vunpack.c.l.b16 %v484
        %v1030 = vunpack.c.h.b16 %v484
        %v1031 = vpack.c.b16 %v779, %v775
        %v1032 = vpack.c.b16 %v780, %v776
        %v1033 = vpack.c.b16 %v781, %v777
        %v1034 = vpack.c.b16 %v782, %v778
        %v1035 = vpack.c.b16 %v787, %v783
        %v1036 = vpack.c.b16 %v788, %v784
        %v1037 = vpack.c.b16 %v789, %v785
        %v1038 = vpack.c.b16 %v790, %v786
        %v1039 = vpack.c.b16 %v795, %v791
        %v1040 = vpack.c.b16 %v796, %v792
        %v1041 = vpack.c.b16 %v797, %v793
        %v1042 = vpack.c.b16 %v798, %v794
        %v1043 = vpack.c.b16 %v803, %v799
        %v1044 = vpack.c.b16 %v804, %v800
        %v1045 = vpack.c.b16 %v805, %v801
        %v1046 = vpack.c.b16 %v806, %v802
        %v1047 = vpack.c.b16 %v811, %v807
        %v1048 = vpack.c.b16 %v812, %v808
        %v1049 = vpack.c.b16 %v813, %v809
        %v1050 = vpack.c.b16 %v814, %v810
        %v1051 = vpack.c.b16 %v819, %v815
        %v1052 = vpack.c.b16 %v820, %v816
        %v1053 = vpack.c.b16 %v821, %v817
        %v1054 = vpack.c.b16 %v822, %v818
        %v1055 = vpack.c.b16 %v827, %v823
        %v1056 = vpack.c.b16 %v828, %v824
        %v1057 = vpack.c.b16 %v829, %v825
        %v1058 = vpack.c.b16 %v830, %v826
        %v1059 = vpack.c.b16 %v835, %v831
        %v1060 = vpack.c.b16 %v836, %v832
        %v1061 = vpack.c.b16 %v837, %v833
        %v1062 = vpack.c.b16 %v838, %v834
        %v1063 = vpack.c.b16 %v843, %v839
        %v1064 = vpack.c.b16 %v844, %v840
        %v1065 = vpack.c.b16 %v845, %v841
        %v1066 = vpack.c.b16 %v846, %v842
        %v1067 = vpack.c.b16 %v851, %v847
        %v1068 = vpack.c.b16 %v852, %v848
        %v1069 = vpack.c.b16 %v853, %v849
        %v1070 = vpack.c.b16 %v854, %v850
        %v1071 = vpack.c.b16 %v859, %v855
        %v1072 = vpack.c.b16 %v860, %v856
        %v1073 = vpack.c.b16 %v861, %v857
        %v1074 = vpack.c.b16 %v862, %v858
        %v1075 = vpack.c.b16 %v867, %v863
        %v1076 = vpack.c.b16 %v868, %v864
        %v1077 = vpack.c.b16 %v869, %v865
        %v1078 = vpack.c.b16 %v870, %v866
        %v1079 = vpack.c.b16 %v875, %v871
        %v1080 = vpack.c.b16 %v876, %v872
        %v1081 = vpack.c.b16 %v877, %v873
        %v1082 = vpack.c.b16 %v878, %v874
        %v1083 = vpack.c.b16 %v883, %v879
        %v1084 = vpack.c.b16 %v884, %v880
        %v1085 = vpack.c.b16 %v885, %v881
        %v1086 = vpack.c.b16 %v886, %v882
        %v1087 = vpack.c.b16 %v891, %v887
        %v1088 = vpack.c.b16 %v892, %v888
        %v1089 = vpack.c.b16 %v893, %v889
        %v1090 = vpack.c.b16 %v894, %v890
        %v1091 = vpack.c.b16 %v899, %v895
        %v1092 = vpack.c.b16 %v900, %v896
        %v1093 = vpack.c.b16 %v901, %v897
        %v1094 = vpack.c.b16 %v902, %v898
        %v1095 = vpack.c.b16 %v907, %v903
        %v1096 = vpack.c.b16 %v908, %v904
        %v1097 = vpack.c.b16 %v909, %v905
        %v1098 = vpack.c.b16 %v910, %v906
        %v1099 = vpack.c.b16 %v915, %v911
        %v1100 = vpack.c.b16 %v916, %v912
        %v1101 = vpack.c.b16 %v917, %v913
        %v1102 = vpack.c.b16 %v918, %v914
        %v1103 = vpack.c.b16 %v923, %v919
        %v1104 = vpack.c.b16 %v924, %v920
        %v1105 = vpack.c.b16 %v925, %v921
        %v1106 = vpack.c.b16 %v926, %v922
        %v1107 = vpack.c.b16 %v931, %v927
        %v1108 = vpack.c.b16 %v932, %v928
        %v1109 = vpack.c.b16 %v933, %v929
        %v1110 = vpack.c.b16 %v934, %v930
        %v1111 = vpack.c.b16 %v939, %v935
        %v1112 = vpack.c.b16 %v940, %v936
        %v1113 = vpack.c.b16 %v941, %v937
        %v1114 = vpack.c.b16 %v942, %v938
        %v1115 = vpack.c.b16 %v947, %v943
        %v1116 = vpack.c.b16 %v948, %v944
        %v1117 = vpack.c.b16 %v949, %v945
        %v1118 = vpack.c.b16 %v950, %v946
        %v1119 = vpack.c.b16 %v955, %v951
        %v1120 = vpack.c.b16 %v956, %v952
        %v1121 = vpack.c.b16 %v957, %v953
        %v1122 = vpack.c.b16 %v958, %v954
        %v1123 = vpack.c.b16 %v963, %v959
        %v1124 = vpack.c.b16 %v964, %v960
        %v1125 = vpack.c.b16 %v965, %v961
        %v1126 = vpack.c.b16 %v966, %v962
        %v1127 = vpack.c.b16 %v971, %v967
        %v1128 = vpack.c.b16 %v972, %v968
        %v1129 = vpack.c.b16 %v973, %v969
        %v1130 = vpack.c.b16 %v974, %v970
        %v1131 = vpack.c.b16 %v979, %v975
        %v1132 = vpack.c.b16 %v980, %v976
        %v1133 = vpack.c.b16 %v981, %v977
        %v1134 = vpack.c.b16 %v982, %v978
        %v1135 = vpack.c.b16 %v987, %v983
        %v1136 = vpack.c.b16 %v988, %v984
        %v1137 = vpack.c.b16 %v989, %v985
        %v1138 = vpack.c.b16 %v990, %v986
        %v1139 = vpack.c.b16 %v995, %v991
        %v1140 = vpack.c.b16 %v996, %v992
        %v1141 = vpack.c.b16 %v997, %v993
        %v1142 = vpack.c.b16 %v998, %v994
        %v1143 = vpack.c.b16 %v1003, %v999
        %v1144 = vpack.c.b16 %v1004, %v1000
        %v1145 = vpack.c.b16 %v1005, %v1001
        %v1146 = vpack.c.b16 %v1006, %v1002
        %v1147 = vpack.c.b16 %v1011, %v1007
        %v1148 = vpack.c.b16 %v1012, %v1008
        %v1149 = vpack.c.b16 %v1013, %v1009
        %v1150 = vpack.c.b16 %v1014, %v1010
        %v1151 = vpack.c.b16 %v1019, %v1015
        %v1152 = vpack.c.b16 %v1020, %v1016
        %v1153 = vpack.c.b16 %v1021, %v1017
        %v1154 = vpack.c.b16 %v1022, %v1018
        %v1155 = vpack.c.b16 %v1027, %v1023
        %v1156 = vpack.c.b16 %v1028, %v1024
        %v1157 = vpack.c.b16 %v1029, %v1025
        %v1158 = vpack.c.b16 %v1030, %v1026
        %1287 = vmatprep.subr.bf16.mxu0 %v1060
        %1288 = vmatpush1.bf16.msra.mxu0 %v1059
        %1289 = vmatprep.subr.bf16.mxu0 %v1056
        %1290 = vmatpush1.bf16.msra.mxu0 %v1055
        %1291 = vmatprep.subr.bf16.mxu0 %v1052
        %1292 = vmatpush1.bf16.msra.mxu0 %v1051
        %1293 = vmatprep.subr.bf16.mxu0 %v1048
        %1294 = vmatpush1.bf16.msra.mxu0 %v1047
        %1295 = vmatprep.subr.bf16.mxu0 %v1044
        %1296 = vmatpush1.bf16.msra.mxu0 %v1043
        %1297 = vmatprep.subr.bf16.mxu0 %v1040
        %1298 = vmatpush1.bf16.msra.mxu0 %v1039
        %1299 = vmatprep.subr.bf16.mxu0 %v1036
        %1300 = vmatpush1.bf16.msra.mxu0 %v1035
        %1301 = vmatprep.subr.bf16.mxu0 %v1032
        %1302 = vmatpush1.bf16.msra.mxu0 %v1031
        %1303 = vmatprep.subr.bf16.mxu0 %v1092
        %1304 = vmatpush2.bf16.msra.mxu0 %v1091
        %1305 = vmatprep.subr.bf16.mxu0 %v1088
        %1306 = vmatpush2.bf16.msra.mxu0 %v1087
        %1307 = vmatprep.subr.bf16.mxu0 %v1084
        %1308 = vmatpush2.bf16.msra.mxu0 %v1083
        %1309 = vmatprep.subr.bf16.mxu0 %v1080
        %1310 = vmatpush2.bf16.msra.mxu0 %v1079
        %1311 = vmatprep.subr.bf16.mxu0 %v1076
        %1312 = vmatpush2.bf16.msra.mxu0 %v1075
        %1313 = vmatprep.subr.bf16.mxu0 %v1072
        %1314 = vmatpush2.bf16.msra.mxu0 %v1071
        %1315 = vmatprep.subr.bf16.mxu0 %v1068
        %1316 = vmatpush2.bf16.msra.mxu0 %v1067
        %1317 = vmatprep.subr.bf16.mxu0 %v1064
        %1318 = vmatpush2.bf16.msra.mxu0 %v1063
        %1319 = vmatprep.mubr.bf16.mxu0 %v592
        %1320 = vmatmul.mubr.bf16.gmra.mxu0 %v591
        %v1321 = vpop.f32.mrf.mxu0
        %v1322 = vadd.f32 %v490, %v1321
        %v1323 = vpop.f32.mrf.mxu0
        %v1324 = vadd.f32 %v494, %v1323
        %v1325 = vpop.f32.mrf.mxu0
        %v1326 = vadd.f32 %v490, %v1325
        %v1327 = vpop.f32.mrf.mxu0
        %v1328 = vadd.f32 %v494, %v1327
        %1329 = vmatprep.mubr.bf16.mxu0 %v596
        %1330 = vmatmul.mubr.bf16.gmra.mxu0 %v595
        %v1331 = vpop.f32.mrf.mxu0
        %v1332 = vadd.f32 %v490, %v1331
        %v1333 = vpop.f32.mrf.mxu0
        %v1334 = vadd.f32 %v494, %v1333
        %v1335 = vpop.f32.mrf.mxu0
        %v1336 = vadd.f32 %v490, %v1335
        %v1337 = vpop.f32.mrf.mxu0
        %v1338 = vadd.f32 %v494, %v1337
        %1339 = vmatprep.mubr.bf16.mxu0 %v600
        %1340 = vmatmul.mubr.bf16.gmra.mxu0 %v599
        %v1341 = vpop.f32.mrf.mxu0
        %v1342 = vadd.f32 %v490, %v1341
        %v1343 = vpop.f32.mrf.mxu0
        %v1344 = vadd.f32 %v494, %v1343
        %v1345 = vpop.f32.mrf.mxu0
        %v1346 = vadd.f32 %v490, %v1345
        %v1347 = vpop.f32.mrf.mxu0
        %v1348 = vadd.f32 %v494, %v1347
        %1349 = vmatprep.mubr.bf16.mxu0 %v604
        %1350 = vmatmul.mubr.bf16.gmra.mxu0 %v603
        %v1351 = vpop.f32.mrf.mxu0
        %v1352 = vadd.f32 %v490, %v1351
        %v1353 = vpop.f32.mrf.mxu0
        %v1354 = vadd.f32 %v494, %v1353
        %v1355 = vpop.f32.mrf.mxu0
        %v1356 = vadd.f32 %v490, %v1355
        %v1357 = vpop.f32.mrf.mxu0
        %v1358 = vadd.f32 %v494, %v1357
        %1359 = vmatprep.mubr.bf16.mxu0 %v608
        %1360 = vmatmul.mubr.bf16.gmra.mxu0 %v607
        %v1361 = vpop.f32.mrf.mxu0
        %v1362 = vadd.f32 %v490, %v1361
        %v1363 = vpop.f32.mrf.mxu0
        %v1364 = vadd.f32 %v494, %v1363
        %v1365 = vpop.f32.mrf.mxu0
        %v1366 = vadd.f32 %v490, %v1365
        %v1367 = vpop.f32.mrf.mxu0
        %v1368 = vadd.f32 %v494, %v1367
        %1369 = vmatprep.mubr.bf16.mxu0 %v612
        %1370 = vmatmul.mubr.bf16.gmra.mxu0 %v611
        %v1371 = vpop.f32.mrf.mxu0
        %v1372 = vadd.f32 %v490, %v1371
        %v1373 = vpop.f32.mrf.mxu0
        %v1374 = vadd.f32 %v494, %v1373
        %v1375 = vpop.f32.mrf.mxu0
        %v1376 = vadd.f32 %v490, %v1375
        %v1377 = vpop.f32.mrf.mxu0
        %v1378 = vadd.f32 %v494, %v1377
        %1379 = vmatprep.mubr.bf16.mxu0 %v616
        %1380 = vmatmul.mubr.bf16.gmra.mxu0 %v615
        %v1381 = vpop.f32.mrf.mxu0
        %v1382 = vadd.f32 %v490, %v1381
        %v1383 = vpop.f32.mrf.mxu0
        %v1384 = vadd.f32 %v494, %v1383
        %v1385 = vpop.f32.mrf.mxu0
        %v1386 = vadd.f32 %v490, %v1385
        %v1387 = vpop.f32.mrf.mxu0
        %v1388 = vadd.f32 %v494, %v1387
        %1389 = vdwg.mxu0
        %1390 = vmatprep.subr.bf16.mxu0 %v1124
        %1391 = vmatpush1.bf16.msra.mxu0 %v1123
        %1392 = vmatprep.subr.bf16.mxu0 %v1120
        %1393 = vmatpush1.bf16.msra.mxu0 %v1119
        %1394 = vmatprep.subr.bf16.mxu0 %v1116
        %1395 = vmatpush1.bf16.msra.mxu0 %v1115
        %1396 = vmatprep.subr.bf16.mxu0 %v1112
        %1397 = vmatpush1.bf16.msra.mxu0 %v1111
        %1398 = vmatprep.subr.bf16.mxu0 %v1108
        %1399 = vmatpush1.bf16.msra.mxu0 %v1107
        %1400 = vmatprep.subr.bf16.mxu0 %v1104
        %1401 = vmatpush1.bf16.msra.mxu0 %v1103
        %1402 = vmatprep.subr.bf16.mxu0 %v1100
        %1403 = vmatpush1.bf16.msra.mxu0 %v1099
        %1404 = vmatprep.subr.bf16.mxu0 %v1096
        %1405 = vmatpush1.bf16.msra.mxu0 %v1095
        %1406 = vmatprep.subr.bf16.mxu0 %v1156
        %1407 = vmatpush2.bf16.msra.mxu0 %v1155
        %1408 = vmatprep.subr.bf16.mxu0 %v1152
        %1409 = vmatpush2.bf16.msra.mxu0 %v1151
        %1410 = vmatprep.subr.bf16.mxu0 %v1148
        %1411 = vmatpush2.bf16.msra.mxu0 %v1147
        %1412 = vmatprep.subr.bf16.mxu0 %v1144
        %1413 = vmatpush2.bf16.msra.mxu0 %v1143
        %1414 = vmatprep.subr.bf16.mxu0 %v1140
        %1415 = vmatpush2.bf16.msra.mxu0 %v1139
        %1416 = vmatprep.subr.bf16.mxu0 %v1136
        %1417 = vmatpush2.bf16.msra.mxu0 %v1135
        %1418 = vmatprep.subr.bf16.mxu0 %v1132
        %1419 = vmatpush2.bf16.msra.mxu0 %v1131
        %1420 = vmatprep.subr.bf16.mxu0 %v1128
        %1421 = vmatpush2.bf16.msra.mxu0 %v1127
        %1422 = vmatprep.mubr.bf16.mxu0 %v594
        %1423 = vmatmul.mubr.bf16.gmra.mxu0 %v593
        %v1424 = vpop.f32.mrf.mxu0
        %v1425 = vadd.f32 %v1322, %v1424
        %v1426 = vpop.f32.mrf.mxu0
        %v1427 = vadd.f32 %v1324, %v1426
        %v1428 = vpop.f32.mrf.mxu0
        %v1429 = vadd.f32 %v1326, %v1428
        %v1430 = vpop.f32.mrf.mxu0
        %v1431 = vadd.f32 %v1328, %v1430
        %1432 = vmatprep.mubr.bf16.mxu0 %v598
        %1433 = vmatmul.mubr.bf16.gmra.mxu0 %v597
        %v1434 = vpop.f32.mrf.mxu0
        %v1435 = vadd.f32 %v1332, %v1434
        %v1436 = vpop.f32.mrf.mxu0
        %v1437 = vadd.f32 %v1334, %v1436
        %v1438 = vpop.f32.mrf.mxu0
        %v1439 = vadd.f32 %v1336, %v1438
        %v1440 = vpop.f32.mrf.mxu0
        %v1441 = vadd.f32 %v1338, %v1440
        %1442 = vmatprep.mubr.bf16.mxu0 %v602
        %1443 = vmatmul.mubr.bf16.gmra.mxu0 %v601
        %v1444 = vpop.f32.mrf.mxu0
        %v1445 = vadd.f32 %v1342, %v1444
        %v1446 = vpop.f32.mrf.mxu0
        %v1447 = vadd.f32 %v1344, %v1446
        %v1448 = vpop.f32.mrf.mxu0
        %v1449 = vadd.f32 %v1346, %v1448
        %v1450 = vpop.f32.mrf.mxu0
        %v1451 = vadd.f32 %v1348, %v1450
        %1452 = vmatprep.mubr.bf16.mxu0 %v606
        %1453 = vmatmul.mubr.bf16.gmra.mxu0 %v605
        %v1454 = vpop.f32.mrf.mxu0
        %v1455 = vadd.f32 %v1352, %v1454
        %v1456 = vpop.f32.mrf.mxu0
        %v1457 = vadd.f32 %v1354, %v1456
        %v1458 = vpop.f32.mrf.mxu0
        %v1459 = vadd.f32 %v1356, %v1458
        %v1460 = vpop.f32.mrf.mxu0
        %v1461 = vadd.f32 %v1358, %v1460
        %1462 = vmatprep.mubr.bf16.mxu0 %v610
        %1463 = vmatmul.mubr.bf16.gmra.mxu0 %v609
        %v1464 = vpop.f32.mrf.mxu0
        %v1465 = vadd.f32 %v1362, %v1464
        %v1466 = vpop.f32.mrf.mxu0
        %v1467 = vadd.f32 %v1364, %v1466
        %v1468 = vpop.f32.mrf.mxu0
        %v1469 = vadd.f32 %v1366, %v1468
        %v1470 = vpop.f32.mrf.mxu0
        %v1471 = vadd.f32 %v1368, %v1470
        %1472 = vmatprep.mubr.bf16.mxu0 %v614
        %1473 = vmatmul.mubr.bf16.gmra.mxu0 %v613
        %v1474 = vpop.f32.mrf.mxu0
        %v1475 = vadd.f32 %v1372, %v1474
        %v1476 = vpop.f32.mrf.mxu0
        %v1477 = vadd.f32 %v1374, %v1476
        %v1478 = vpop.f32.mrf.mxu0
        %v1479 = vadd.f32 %v1376, %v1478
        %v1480 = vpop.f32.mrf.mxu0
        %v1481 = vadd.f32 %v1378, %v1480
        %1482 = vmatprep.mubr.bf16.mxu0 %v618
        %1483 = vmatmul.mubr.bf16.gmra.mxu0 %v617
        %v1484 = vpop.f32.mrf.mxu0
        %v1485 = vadd.f32 %v1382, %v1484
        %v1486 = vpop.f32.mrf.mxu0
        %v1487 = vadd.f32 %v1384, %v1486
        %v1488 = vpop.f32.mrf.mxu0
        %v1489 = vadd.f32 %v1386, %v1488
        %v1490 = vpop.f32.mrf.mxu0
        %v1491 = vadd.f32 %v1388, %v1490
        %1492 = vdwg.mxu0
        %1493 = vmatprep.subr.bf16.mxu0 %v1062
        %1494 = vmatpush1.bf16.msra.mxu0 %v1061
        %1495 = vmatprep.subr.bf16.mxu0 %v1058
        %1496 = vmatpush1.bf16.msra.mxu0 %v1057
        %1497 = vmatprep.subr.bf16.mxu0 %v1054
        %1498 = vmatpush1.bf16.msra.mxu0 %v1053
        %1499 = vmatprep.subr.bf16.mxu0 %v1050
        %1500 = vmatpush1.bf16.msra.mxu0 %v1049
        %1501 = vmatprep.subr.bf16.mxu0 %v1046
        %1502 = vmatpush1.bf16.msra.mxu0 %v1045
        %1503 = vmatprep.subr.bf16.mxu0 %v1042
        %1504 = vmatpush1.bf16.msra.mxu0 %v1041
        %1505 = vmatprep.subr.bf16.mxu0 %v1038
        %1506 = vmatpush1.bf16.msra.mxu0 %v1037
        %1507 = vmatprep.subr.bf16.mxu0 %v1034
        %1508 = vmatpush1.bf16.msra.mxu0 %v1033
        %1509 = vmatprep.subr.bf16.mxu0 %v1094
        %1510 = vmatpush2.bf16.msra.mxu0 %v1093
        %1511 = vmatprep.subr.bf16.mxu0 %v1090
        %1512 = vmatpush2.bf16.msra.mxu0 %v1089
        %1513 = vmatprep.subr.bf16.mxu0 %v1086
        %1514 = vmatpush2.bf16.msra.mxu0 %v1085
        %1515 = vmatprep.subr.bf16.mxu0 %v1082
        %1516 = vmatpush2.bf16.msra.mxu0 %v1081
        %1517 = vmatprep.subr.bf16.mxu0 %v1078
        %1518 = vmatpush2.bf16.msra.mxu0 %v1077
        %1519 = vmatprep.subr.bf16.mxu0 %v1074
        %1520 = vmatpush2.bf16.msra.mxu0 %v1073
        %1521 = vmatprep.subr.bf16.mxu0 %v1070
        %1522 = vmatpush2.bf16.msra.mxu0 %v1069
        %1523 = vmatprep.subr.bf16.mxu0 %v1066
        %1524 = vmatpush2.bf16.msra.mxu0 %v1065
        %1525 = vmatprep.mubr.bf16.mxu0 %v592
        %1526 = vmatmul.mubr.bf16.gmra.mxu0 %v591
        %v1527 = vpop.f32.mrf.mxu0
        %v1528 = vadd.f32 %v498, %v1527
        %v1529 = vpop.f32.mrf.mxu0
        %v1530 = vadd.f32 %v502, %v1529
        %v1531 = vpop.f32.mrf.mxu0
        %v1532 = vadd.f32 %v498, %v1531
        %v1533 = vpop.f32.mrf.mxu0
        %v1534 = vadd.f32 %v502, %v1533
        %1535 = vmatprep.mubr.bf16.mxu0 %v596
        %1536 = vmatmul.mubr.bf16.gmra.mxu0 %v595
        %v1537 = vpop.f32.mrf.mxu0
        %v1538 = vadd.f32 %v498, %v1537
        %v1539 = vpop.f32.mrf.mxu0
        %v1540 = vadd.f32 %v502, %v1539
        %v1541 = vpop.f32.mrf.mxu0
        %v1542 = vadd.f32 %v498, %v1541
        %v1543 = vpop.f32.mrf.mxu0
        %v1544 = vadd.f32 %v502, %v1543
        %1545 = vmatprep.mubr.bf16.mxu0 %v600
        %1546 = vmatmul.mubr.bf16.gmra.mxu0 %v599
        %v1547 = vpop.f32.mrf.mxu0
        %v1548 = vadd.f32 %v498, %v1547
        %v1549 = vpop.f32.mrf.mxu0
        %v1550 = vadd.f32 %v502, %v1549
        %v1551 = vpop.f32.mrf.mxu0
        %v1552 = vadd.f32 %v498, %v1551
        %v1553 = vpop.f32.mrf.mxu0
        %v1554 = vadd.f32 %v502, %v1553
        %1555 = vmatprep.mubr.bf16.mxu0 %v604
        %1556 = vmatmul.mubr.bf16.gmra.mxu0 %v603
        %v1557 = vpop.f32.mrf.mxu0
        %v1558 = vadd.f32 %v498, %v1557
        %v1559 = vpop.f32.mrf.mxu0
        %v1560 = vadd.f32 %v502, %v1559
        %v1561 = vpop.f32.mrf.mxu0
        %v1562 = vadd.f32 %v498, %v1561
        %v1563 = vpop.f32.mrf.mxu0
        %v1564 = vadd.f32 %v502, %v1563
        %1565 = vmatprep.mubr.bf16.mxu0 %v608
        %1566 = vmatmul.mubr.bf16.gmra.mxu0 %v607
        %v1567 = vpop.f32.mrf.mxu0
        %v1568 = vadd.f32 %v498, %v1567
        %v1569 = vpop.f32.mrf.mxu0
        %v1570 = vadd.f32 %v502, %v1569
        %v1571 = vpop.f32.mrf.mxu0
        %v1572 = vadd.f32 %v498, %v1571
        %v1573 = vpop.f32.mrf.mxu0
        %v1574 = vadd.f32 %v502, %v1573
        %1575 = vmatprep.mubr.bf16.mxu0 %v612
        %1576 = vmatmul.mubr.bf16.gmra.mxu0 %v611
        %v1577 = vpop.f32.mrf.mxu0
        %v1578 = vadd.f32 %v498, %v1577
        %v1579 = vpop.f32.mrf.mxu0
        %v1580 = vadd.f32 %v502, %v1579
        %v1581 = vpop.f32.mrf.mxu0
        %v1582 = vadd.f32 %v498, %v1581
        %v1583 = vpop.f32.mrf.mxu0
        %v1584 = vadd.f32 %v502, %v1583
        %1585 = vmatprep.mubr.bf16.mxu0 %v616
        %1586 = vmatmul.mubr.bf16.gmra.mxu0 %v615
        %v1587 = vpop.f32.mrf.mxu0
        %v1588 = vadd.f32 %v498, %v1587
        %v1589 = vpop.f32.mrf.mxu0
        %v1590 = vadd.f32 %v502, %v1589
        %v1591 = vpop.f32.mrf.mxu0
        %v1592 = vadd.f32 %v498, %v1591
        %v1593 = vpop.f32.mrf.mxu0
        %v1594 = vadd.f32 %v502, %v1593
        %1595 = vdwg.mxu0
        %1596 = vmatprep.subr.bf16.mxu0 %v1126
        %1597 = vmatpush1.bf16.msra.mxu0 %v1125
        %1598 = vmatprep.subr.bf16.mxu0 %v1122
        %1599 = vmatpush1.bf16.msra.mxu0 %v1121
        %1600 = vmatprep.subr.bf16.mxu0 %v1118
        %1601 = vmatpush1.bf16.msra.mxu0 %v1117
        %1602 = vmatprep.subr.bf16.mxu0 %v1114
        %1603 = vmatpush1.bf16.msra.mxu0 %v1113
        %1604 = vmatprep.subr.bf16.mxu0 %v1110
        %1605 = vmatpush1.bf16.msra.mxu0 %v1109
        %1606 = vmatprep.subr.bf16.mxu0 %v1106
        %1607 = vmatpush1.bf16.msra.mxu0 %v1105
        %1608 = vmatprep.subr.bf16.mxu0 %v1102
        %1609 = vmatpush1.bf16.msra.mxu0 %v1101
        %1610 = vmatprep.subr.bf16.mxu0 %v1098
        %1611 = vmatpush1.bf16.msra.mxu0 %v1097
        %1612 = vmatprep.subr.bf16.mxu0 %v1158
        %1613 = vmatpush2.bf16.msra.mxu0 %v1157
        %1614 = vmatprep.subr.bf16.mxu0 %v1154
        %1615 = vmatpush2.bf16.msra.mxu0 %v1153
        %1616 = vmatprep.subr.bf16.mxu0 %v1150
        %1617 = vmatpush2.bf16.msra.mxu0 %v1149
        %1618 = vmatprep.subr.bf16.mxu0 %v1146
        %1619 = vmatpush2.bf16.msra.mxu0 %v1145
        %1620 = vmatprep.subr.bf16.mxu0 %v1142
        %1621 = vmatpush2.bf16.msra.mxu0 %v1141
        %1622 = vmatprep.subr.bf16.mxu0 %v1138
        %1623 = vmatpush2.bf16.msra.mxu0 %v1137
        %1624 = vmatprep.subr.bf16.mxu0 %v1134
        %1625 = vmatpush2.bf16.msra.mxu0 %v1133
        %1626 = vmatprep.subr.bf16.mxu0 %v1130
        %1627 = vmatpush2.bf16.msra.mxu0 %v1129
        %1628 = vmatprep.mubr.bf16.mxu0 %v594
        %1629 = vmatmul.mubr.bf16.gmra.mxu0 %v593
        %v1630 = vpop.f32.mrf.mxu0
        %v1631 = vadd.f32 %v1528, %v1630
        %v1632 = vpop.f32.mrf.mxu0
        %v1633 = vadd.f32 %v1530, %v1632
        %v1634 = vpop.f32.mrf.mxu0
        %v1635 = vadd.f32 %v1532, %v1634
        %v1636 = vpop.f32.mrf.mxu0
        %v1637 = vadd.f32 %v1534, %v1636
        %1638 = vmatprep.mubr.bf16.mxu0 %v598
        %1639 = vmatmul.mubr.bf16.gmra.mxu0 %v597
        %v1640 = vpop.f32.mrf.mxu0
        %v1641 = vadd.f32 %v1538, %v1640
        %v1642 = vpop.f32.mrf.mxu0
        %v1643 = vadd.f32 %v1540, %v1642
        %v1644 = vpop.f32.mrf.mxu0
        %v1645 = vadd.f32 %v1542, %v1644
        %v1646 = vpop.f32.mrf.mxu0
        %v1647 = vadd.f32 %v1544, %v1646
        %1648 = vmatprep.mubr.bf16.mxu0 %v602
        %1649 = vmatmul.mubr.bf16.gmra.mxu0 %v601
        %v1650 = vpop.f32.mrf.mxu0
        %v1651 = vadd.f32 %v1548, %v1650
        %v1652 = vpop.f32.mrf.mxu0
        %v1653 = vadd.f32 %v1550, %v1652
        %v1654 = vpop.f32.mrf.mxu0
        %v1655 = vadd.f32 %v1552, %v1654
        %v1656 = vpop.f32.mrf.mxu0
        %v1657 = vadd.f32 %v1554, %v1656
        %1658 = vmatprep.mubr.bf16.mxu0 %v606
        %1659 = vmatmul.mubr.bf16.gmra.mxu0 %v605
        %v1660 = vpop.f32.mrf.mxu0
        %v1661 = vadd.f32 %v1558, %v1660
        %v1662 = vpop.f32.mrf.mxu0
        %v1663 = vadd.f32 %v1560, %v1662
        %v1664 = vpop.f32.mrf.mxu0
        %v1665 = vadd.f32 %v1562, %v1664
        %v1666 = vpop.f32.mrf.mxu0
        %v1667 = vadd.f32 %v1564, %v1666
        %1668 = vmatprep.mubr.bf16.mxu0 %v610
        %1669 = vmatmul.mubr.bf16.gmra.mxu0 %v609
        %v1670 = vpop.f32.mrf.mxu0
        %v1671 = vadd.f32 %v1568, %v1670
        %v1672 = vpop.f32.mrf.mxu0
        %v1673 = vadd.f32 %v1570, %v1672
        %v1674 = vpop.f32.mrf.mxu0
        %v1675 = vadd.f32 %v1572, %v1674
        %v1676 = vpop.f32.mrf.mxu0
        %v1677 = vadd.f32 %v1574, %v1676
        %1678 = vmatprep.mubr.bf16.mxu0 %v614
        %1679 = vmatmul.mubr.bf16.gmra.mxu0 %v613
        %v1680 = vpop.f32.mrf.mxu0
        %v1681 = vadd.f32 %v1578, %v1680
        %v1682 = vpop.f32.mrf.mxu0
        %v1683 = vadd.f32 %v1580, %v1682
        %v1684 = vpop.f32.mrf.mxu0
        %v1685 = vadd.f32 %v1582, %v1684
        %v1686 = vpop.f32.mrf.mxu0
        %v1687 = vadd.f32 %v1584, %v1686
        %1688 = vmatprep.mubr.bf16.mxu0 %v618
        %1689 = vmatmul.mubr.bf16.gmra.mxu0 %v617
        %v1690 = vpop.f32.mrf.mxu0
        %v1691 = vadd.f32 %v1588, %v1690
        %v1692 = vpop.f32.mrf.mxu0
        %v1693 = vadd.f32 %v1590, %v1692
        %v1694 = vpop.f32.mrf.mxu0
        %v1695 = vadd.f32 %v1592, %v1694
        %v1696 = vpop.f32.mrf.mxu0
        %v1697 = vadd.f32 %v1594, %v1696
        %1698 = vdwg.mxu0
        %v1699 = vmax.f32 %v1425, 0.0
        %v1700 = vmax.f32 %v1427, 0.0
        %v1701 = vmax.f32 %v1631, 0.0
        %v1702 = vmax.f32 %v1633, 0.0
        %v1703 = vmax.f32 %v1429, 0.0
        %v1704 = vmax.f32 %v1431, 0.0
        %v1705 = vmax.f32 %v1635, 0.0
        %v1706 = vmax.f32 %v1637, 0.0
        %v1707 = vmax.f32 %v1435, 0.0
        %v1708 = vmax.f32 %v1437, 0.0
        %v1709 = vmax.f32 %v1641, 0.0
        %v1710 = vmax.f32 %v1643, 0.0
        %v1711 = vmax.f32 %v1439, 0.0
        %v1712 = vmax.f32 %v1441, 0.0
        %v1713 = vmax.f32 %v1645, 0.0
        %v1714 = vmax.f32 %v1647, 0.0
        %v1715 = vmax.f32 %v1445, 0.0
        %v1716 = vmax.f32 %v1447, 0.0
        %v1717 = vmax.f32 %v1651, 0.0
        %v1718 = vmax.f32 %v1653, 0.0
        %v1719 = vmax.f32 %v1449, 0.0
        %v1720 = vmax.f32 %v1451, 0.0
        %v1721 = vmax.f32 %v1655, 0.0
        %v1722 = vmax.f32 %v1657, 0.0
        %v1723 = vmax.f32 %v1455, 0.0
        %v1724 = vmax.f32 %v1457, 0.0
        %v1725 = vmax.f32 %v1661, 0.0
        %v1726 = vmax.f32 %v1663, 0.0
        %v1727 = vmax.f32 %v1459, 0.0
        %v1728 = vmax.f32 %v1461, 0.0
        %v1729 = vmax.f32 %v1665, 0.0
        %v1730 = vmax.f32 %v1667, 0.0
        %v1731 = vmax.f32 %v1465, 0.0
        %v1732 = vmax.f32 %v1467, 0.0
        %v1733 = vmax.f32 %v1671, 0.0
        %v1734 = vmax.f32 %v1673, 0.0
        %v1735 = vmax.f32 %v1469, 0.0
        %v1736 = vmax.f32 %v1471, 0.0
        %v1737 = vmax.f32 %v1675, 0.0
        %v1738 = vmax.f32 %v1677, 0.0
        %v1739 = vmax.f32 %v1475, 0.0
        %v1740 = vmax.f32 %v1477, 0.0
        %v1741 = vmax.f32 %v1681, 0.0
        %v1742 = vmax.f32 %v1683, 0.0
        %v1743 = vmax.f32 %v1479, 0.0
        %v1744 = vmax.f32 %v1481, 0.0
        %v1745 = vmax.f32 %v1685, 0.0
        %v1746 = vmax.f32 %v1687, 0.0
        %v1747 = vmax.f32 %v1485, 0.0
        %v1748 = vmax.f32 %v1487, 0.0
        %v1749 = vmax.f32 %v1691, 0.0
        %v1750 = vmax.f32 %v1693, 0.0
        %v1751 = vmax.f32 %v1489, 0.0
        %v1752 = vmax.f32 %v1491, 0.0
        %v1753 = vmax.f32 %v1695, 0.0
        %v1754 = vmax.f32 %v1697, 0.0
        %v1755 = vpack.c.bf16 %v1703, %v1699
        %v1756 = vpack.c.bf16 %v1704, %v1700
        %v1757 = vpack.c.bf16 %v1705, %v1701
        %v1758 = vpack.c.bf16 %v1706, %v1702
        %v1759 = vpack.c.bf16 %v1711, %v1707
        %v1760 = vpack.c.bf16 %v1712, %v1708
        %v1761 = vpack.c.bf16 %v1713, %v1709
        %v1762 = vpack.c.bf16 %v1714, %v1710
        %v1763 = vpack.c.bf16 %v1719, %v1715
        %v1764 = vpack.c.bf16 %v1720, %v1716
        %v1765 = vpack.c.bf16 %v1721, %v1717
        %v1766 = vpack.c.bf16 %v1722, %v1718
        %v1767 = vpack.c.bf16 %v1727, %v1723
        %v1768 = vpack.c.bf16 %v1728, %v1724
        %v1769 = vpack.c.bf16 %v1729, %v1725
        %v1770 = vpack.c.bf16 %v1730, %v1726
        %v1771 = vpack.c.bf16 %v1735, %v1731
        %v1772 = vpack.c.bf16 %v1736, %v1732
        %v1773 = vpack.c.bf16 %v1737, %v1733
        %v1774 = vpack.c.bf16 %v1738, %v1734
        %v1775 = vpack.c.bf16 %v1743, %v1739
        %v1776 = vpack.c.bf16 %v1744, %v1740
        %v1777 = vpack.c.bf16 %v1745, %v1741
        %v1778 = vpack.c.bf16 %v1746, %v1742
        %v1779 = vpack.c.bf16 %v1751, %v1747
        %v1780 = vpack.c.bf16 %v1752, %v1748
        %v1781 = vpack.c.bf16 %v1753, %v1749
        %v1782 = vpack.c.bf16 %v1754, %v1750
        %v1811 = vunpack.c.l.b16 %v1755
        %v1812 = vunpack.c.l.b16 %v1756
        %v1813 = vunpack.c.l.b16 %v1757
        %v1814 = vunpack.c.l.b16 %v1758
        %v1815 = vunpack.c.h.b16 %v1755
        %v1816 = vunpack.c.h.b16 %v1756
        %v1817 = vunpack.c.h.b16 %v1757
        %v1818 = vunpack.c.h.b16 %v1758
        %v1819 = vunpack.c.l.b16 %v1759
        %v1820 = vunpack.c.l.b16 %v1760
        %v1821 = vunpack.c.l.b16 %v1761
        %v1822 = vunpack.c.l.b16 %v1762
        %v1823 = vunpack.c.h.b16 %v1759
        %v1824 = vunpack.c.h.b16 %v1760
        %v1825 = vunpack.c.h.b16 %v1761
        %v1826 = vunpack.c.h.b16 %v1762
        %v1827 = vunpack.c.l.b16 %v1763
        %v1828 = vunpack.c.l.b16 %v1764
        %v1829 = vunpack.c.l.b16 %v1765
        %v1830 = vunpack.c.l.b16 %v1766
        %v1831 = vunpack.c.h.b16 %v1763
        %v1832 = vunpack.c.h.b16 %v1764
        %v1833 = vunpack.c.h.b16 %v1765
        %v1834 = vunpack.c.h.b16 %v1766
        %v1835 = vunpack.c.l.b16 %v1767
        %v1836 = vunpack.c.l.b16 %v1768
        %v1837 = vunpack.c.l.b16 %v1769
        %v1838 = vunpack.c.l.b16 %v1770
        %v1839 = vunpack.c.h.b16 %v1767
        %v1840 = vunpack.c.h.b16 %v1768
        %v1841 = vunpack.c.h.b16 %v1769
        %v1842 = vunpack.c.h.b16 %v1770
        %v1843 = vunpack.c.l.b16 %v1771
        %v1844 = vunpack.c.l.b16 %v1772
        %v1845 = vunpack.c.l.b16 %v1773
        %v1846 = vunpack.c.l.b16 %v1774
        %v1847 = vunpack.c.h.b16 %v1771
        %v1848 = vunpack.c.h.b16 %v1772
        %v1849 = vunpack.c.h.b16 %v1773
        %v1850 = vunpack.c.h.b16 %v1774
        %v1851 = vunpack.c.l.b16 %v1775
        %v1852 = vunpack.c.l.b16 %v1776
        %v1853 = vunpack.c.l.b16 %v1777
        %v1854 = vunpack.c.l.b16 %v1778
        %v1855 = vunpack.c.h.b16 %v1775
        %v1856 = vunpack.c.h.b16 %v1776
        %v1857 = vunpack.c.h.b16 %v1777
        %v1858 = vunpack.c.h.b16 %v1778
        %v1859 = vunpack.c.l.b16 %v1779
        %v1860 = vunpack.c.l.b16 %v1780
        %v1861 = vunpack.c.l.b16 %v1781
        %v1862 = vunpack.c.l.b16 %v1782
        %v1863 = vunpack.c.h.b16 %v1779
        %v1864 = vunpack.c.h.b16 %v1780
        %v1865 = vunpack.c.h.b16 %v1781
        %v1866 = vunpack.c.h.b16 %v1782
        %v1867 = vpack.c.b16 %v1812, %v1811
        %v1868 = vpack.c.b16 %v1814, %v1813
        %v1869 = vpack.c.b16 %v1816, %v1815
        %v1870 = vpack.c.b16 %v1818, %v1817
        %v1871 = vpack.c.b16 %v1820, %v1819
        %v1872 = vpack.c.b16 %v1822, %v1821
        %v1873 = vpack.c.b16 %v1824, %v1823
        %v1874 = vpack.c.b16 %v1826, %v1825
        %v1875 = vpack.c.b16 %v1828, %v1827
        %v1876 = vpack.c.b16 %v1830, %v1829
        %v1877 = vpack.c.b16 %v1832, %v1831
        %v1878 = vpack.c.b16 %v1834, %v1833
        %v1879 = vpack.c.b16 %v1836, %v1835
        %v1880 = vpack.c.b16 %v1838, %v1837
        %v1881 = vpack.c.b16 %v1840, %v1839
        %v1882 = vpack.c.b16 %v1842, %v1841
        %v1883 = vpack.c.b16 %v1844, %v1843
        %v1884 = vpack.c.b16 %v1846, %v1845
        %v1885 = vpack.c.b16 %v1848, %v1847
        %v1886 = vpack.c.b16 %v1850, %v1849
        %v1887 = vpack.c.b16 %v1852, %v1851
        %v1888 = vpack.c.b16 %v1854, %v1853
        %v1889 = vpack.c.b16 %v1856, %v1855
        %v1890 = vpack.c.b16 %v1858, %v1857
        %v1891 = vpack.c.b16 %v1860, %v1859
        %v1892 = vpack.c.b16 %v1862, %v1861
        %v1893 = vpack.c.b16 %v1864, %v1863
        %v1894 = vpack.c.b16 %v1866, %v1865
        %1923 = vst [vmem:[#allocation2] sm:$0xff] %v1867
        %1924 = vst [vmem:[#allocation2 + $0x8] sm:$0xff] %v1868
        %1925 = vst [vmem:[#allocation2 + $0x10] sm:$0xff] %v1869
        %1926 = vst [vmem:[#allocation2 + $0x18] sm:$0xff] %v1870
        %1927 = vst [vmem:[#allocation2 + $0x20] sm:$0xff] %v1871
        %1928 = vst [vmem:[#allocation2 + $0x28] sm:$0xff] %v1872
        %1929 = vst [vmem:[#allocation2 + $0x30] sm:$0xff] %v1873
        %1930 = vst [vmem:[#allocation2 + $0x38] sm:$0xff] %v1874
        %1931 = vst [vmem:[#allocation2 + $0x40] sm:$0xff] %v1875
        %1932 = vst [vmem:[#allocation2 + $0x48] sm:$0xff] %v1876
        %1933 = vst [vmem:[#allocation2 + $0x50] sm:$0xff] %v1877
        %1934 = vst [vmem:[#allocation2 + $0x58] sm:$0xff] %v1878
        %1935 = vst [vmem:[#allocation2 + $0x60] sm:$0xff] %v1879
        %1936 = vst [vmem:[#allocation2 + $0x68] sm:$0xff] %v1880
        %1937 = vst [vmem:[#allocation2 + $0x70] sm:$0xff] %v1881
        %1938 = vst [vmem:[#allocation2 + $0x78] sm:$0xff] %v1882
        %1939 = vst [vmem:[#allocation2 + $0x80] sm:$0xff] %v1883
        %1940 = vst [vmem:[#allocation2 + $0x88] sm:$0xff] %v1884
        %1941 = vst [vmem:[#allocation2 + $0x90] sm:$0xff] %v1885
        %1942 = vst [vmem:[#allocation2 + $0x98] sm:$0xff] %v1886
        %1943 = vst [vmem:[#allocation2 + $0xa0] sm:$0xff] %v1887
        %1944 = vst [vmem:[#allocation2 + $0xa8] sm:$0xff] %v1888
        %1945 = vst [vmem:[#allocation2 + $0xb0] sm:$0xff] %v1889
        %1946 = vst [vmem:[#allocation2 + $0xb8] sm:$0xff] %v1890
        %1947 = vst [vmem:[#allocation2 + $0xc0] sm:$0xff] %v1891
        %1948 = vst [vmem:[#allocation2 + $0xc8] sm:$0xff] %v1892
        %1949 = vst [vmem:[#allocation2 + $0xd0] sm:$0xff] %v1893
        %1950 = vst [vmem:[#allocation2 + $0xd8] sm:$0xff] %v1894
        %p1951 = scmp.eq.s32.totalorder %s25, 4
        // Predicated region
        $region45: #{forward.1} parent=31 // pred_check
          %p1952 = pneg %p1951
        $region46: #{forward.1} parent=31 // pred_check_branch
          %1954 = sbr.rel (%p1952) target = $region48
        $region47: #{forward.1} parent=31 // pred_region
          %1955 = vst [vmem:[%s267] sm:$0xff] %v1699
          %1956 = vst [vmem:[%s267 + $0x8] sm:$0xff] %v1700
          %1957 = vst [vmem:[%s267 + $0x10] sm:$0xff] %v1701
          %1958 = vst [vmem:[%s267 + $0x18] sm:$0xff] %v1702
          %1959 = vst [vmem:[%s267 + $0x20] sm:$0xff] %v1703
          %1960 = vst [vmem:[%s267 + $0x28] sm:$0xff] %v1704
          %1961 = vst [vmem:[%s267 + $0x30] sm:$0xff] %v1705
          %1962 = vst [vmem:[%s267 + $0x38] sm:$0xff] %v1706
          %1963 = vst [vmem:[%s267 + $0x40] sm:$0xff] %v1707
          %1964 = vst [vmem:[%s267 + $0x48] sm:$0xff] %v1708
          %1965 = vst [vmem:[%s267 + $0x50] sm:$0xff] %v1709
          %1966 = vst [vmem:[%s267 + $0x58] sm:$0xff] %v1710
          %1967 = vst [vmem:[%s267 + $0x60] sm:$0xff] %v1711
          %1968 = vst [vmem:[%s267 + $0x68] sm:$0xff] %v1712
          %1969 = vst [vmem:[%s267 + $0x70] sm:$0xff] %v1713
          %1970 = vst [vmem:[%s267 + $0x78] sm:$0xff] %v1714
          %1971 = vst [vmem:[%s267 + $0x80] sm:$0xff] %v1715
          %1972 = vst [vmem:[%s267 + $0x88] sm:$0xff] %v1716
          %1973 = vst [vmem:[%s267 + $0x90] sm:$0xff] %v1717
          %1974 = vst [vmem:[%s267 + $0x98] sm:$0xff] %v1718
          %1975 = vst [vmem:[%s267 + $0xa0] sm:$0xff] %v1719
          %1976 = vst [vmem:[%s267 + $0xa8] sm:$0xff] %v1720
          %1977 = vst [vmem:[%s267 + $0xb0] sm:$0xff] %v1721
          %1978 = vst [vmem:[%s267 + $0xb8] sm:$0xff] %v1722
          %1979 = vst [vmem:[%s267 + $0xc0] sm:$0xff] %v1723
          %1980 = vst [vmem:[%s267 + $0xc8] sm:$0xff] %v1724
          %1981 = vst [vmem:[%s267 + $0xd0] sm:$0xff] %v1725
          %1982 = vst [vmem:[%s267 + $0xd8] sm:$0xff] %v1726
          %1983 = vst [vmem:[%s267 + $0xe0] sm:$0xff] %v1727
          %1984 = vst [vmem:[%s267 + $0xe8] sm:$0xff] %v1728
          %1985 = vst [vmem:[%s267 + $0xf0] sm:$0xff] %v1729
          %1986 = vst [vmem:[%s267 + $0xf8] sm:$0xff] %v1730
          %1987 = vst [vmem:[%s267 + $0x100] sm:$0xff] %v1731
          %1988 = vst [vmem:[%s267 + $0x108] sm:$0xff] %v1732
          %1989 = vst [vmem:[%s267 + $0x110] sm:$0xff] %v1733
          %1990 = vst [vmem:[%s267 + $0x118] sm:$0xff] %v1734
          %1991 = vst [vmem:[%s267 + $0x120] sm:$0xff] %v1735
          %1992 = vst [vmem:[%s267 + $0x128] sm:$0xff] %v1736
          %1993 = vst [vmem:[%s267 + $0x130] sm:$0xff] %v1737
          %1994 = vst [vmem:[%s267 + $0x138] sm:$0xff] %v1738
          %1995 = vst [vmem:[%s267 + $0x140] sm:$0xff] %v1739
          %1996 = vst [vmem:[%s267 + $0x148] sm:$0xff] %v1740
          %1997 = vst [vmem:[%s267 + $0x150] sm:$0xff] %v1741
          %1998 = vst [vmem:[%s267 + $0x158] sm:$0xff] %v1742
          %1999 = vst [vmem:[%s267 + $0x160] sm:$0xff] %v1743
          %2000 = vst [vmem:[%s267 + $0x168] sm:$0xff] %v1744
          %2001 = vst [vmem:[%s267 + $0x170] sm:$0xff] %v1745
          %2002 = vst [vmem:[%s267 + $0x178] sm:$0xff] %v1746
          %2003 = vst [vmem:[%s267 + $0x180] sm:$0xff] %v1747
          %2004 = vst [vmem:[%s267 + $0x188] sm:$0xff] %v1748
          %2005 = vst [vmem:[%s267 + $0x190] sm:$0xff] %v1749
          %2006 = vst [vmem:[%s267 + $0x198] sm:$0xff] %v1750
          %2007 = vst [vmem:[%s267 + $0x1a0] sm:$0xff] %v1751
          %2008 = vst [vmem:[%s267 + $0x1a8] sm:$0xff] %v1752
          %2009 = vst [vmem:[%s267 + $0x1b0] sm:$0xff] %v1753
          %2010 = vst [vmem:[%s267 + $0x1b8] sm:$0xff] %v1754
        $region48: #{forward.1} parent=31 // pred_fallthru
          _
        %s2011 = smul.u32 14, %s24
        %p2012 = scmp.lt.s32.totalorder %s2011, 27
        %s2013 = scalar_select %p2012, %s2011, 27
        %s2014 = smul.addr %s2013, 4
        %s2015 = smul.addr %s2014, 8
        %s2016 = scalar_lea.vmem %s3, %s2015
        // Predicated region
        $region49: #{forward.1} parent=31 // pred_check
          %p2017 = pneg %p128
        $region50: #{forward.1} parent=31 // pred_check_branch
          %2019 = sbr.rel (%p2017) target = $region52
        $region51: #{forward.1} parent=31 // pred_region
          %s2020 = smul.u32 14, %s24
        $region52: #{forward.1} parent=31 // pred_fallthru
          _
      $region32: #{forward.1} parent=5 // pred_fallthru
        _
      %p2021 = scmp.le.s32.totalorder 2, %s15
      // Predicated region
      $region53: #{forward.1} parent=5 // pred_check
        %p2022 = pneg %p2021
      $region54: #{forward.1} parent=5 // pred_check_branch
        %2024 = sbr.rel (%p2022) target = $region56
      $region55: #{forward.1} parent=5 // pred_region
        %s2025 = ssub.s32 %s15, 2
        // Predicated region
        $region57: #{forward.1} parent=55 // pred_check
          %p2026 = pneg %p134
        $region58: #{forward.1} parent=55 // pred_check_branch
          %2028 = sbr.rel (%p2026) target = $region60
        $region59: #{forward.1} parent=55 // pred_region
          %s2029 = smul.u32 14, %s26
          %p2030 = scmp.lt.s32.totalorder %s2029, 27
          %s2031 = scalar_select %p2030, %s2029, 27
          %s2032 = smul.addr %s2031, 4
          %s2033 = smul.addr %s2032, 8
          %s2034 = scalar_lea.vmem %s3, %s2033
        $region60: #{forward.1} parent=55 // pred_fallthru
          _
      $region56: #{forward.1} parent=5 // pred_fallthru
        _
    $region6: #{forward.1} parent=1 // loop_footer
      %s19 = sadd.s32 1, %s15
    $region7: #{forward.1} parent=1 // loop_footer_branch
      %14 = sbr.rel target = $region3
    $region8: #{forward.1} parent=1 // loop_exit
      _
    %2035 = vsyncpa [#allocation4], 1
    %s2036 = scalar_lea.sflag [#allocation4], 1
    %2037 = vsyncpa %s2036, 1
    %2038 = vsyncpa [#allocation6], 1
    %s2039 = scalar_lea.sflag [#allocation6], 1
    %2040 = vsyncpa %s2039, 1

</llo_original>
